<compile_context>
chip_gen: v7x
topology: tpu7x:2x2x1
jax: 0.10.0
libtpu: 0.0.40
codegen_flags: <defaults>
</compile_context>

<pallas_src>
import functools

import jax
import jax.numpy as jnp
from jax.experimental import pallas as pl
from jax.experimental.pallas import tpu as pltpu


def _round_up(x, m):
    return ((x + m - 1) // m) * m


def _fused_gated_conv_kernel(x_ref, w_ref, b_ref,
                             raw_ref, score_ref, sum_ref, sq_ref,
                             *, c_out, k_taps, stride, dilation, tl, win_w, l_out):
    """Pass 1: fused (raw|mask) conv over an upsampled window, gating, partial BN stats.

    x_ref    : (1, L_pad, C_in)    padded x2-upsampled input, channel-last, whole row resident
    w_ref    : (K, 2*C_out, C_in)  stacked conv weights [raw ; mask]
    b_ref    : (2*C_out, 1)        stacked bias column
    raw_ref  : (1, C_out, TL)      LeakyReLU(conv_raw)   (lane-dense along L)
    score_ref: (1, C_out, TL)      sigmoid(conv_mask)
    sum_ref  : (1, 1, C_out, 1)    per-tile sum  of gated (masked to valid L)
    sq_ref   : (1, 1, C_out, 1)    per-tile sum of gated^2
    """
    lt = pl.program_id(1)
    base = pl.multiple_of(lt * (tl * stride), 8)

    # One contiguous window covers every tap of this output tile (read from VMEM once).
    window = x_ref[0, pl.ds(base, win_w), :]                      # (win_w, C_in)
    w_all = w_ref[...]                                            # (K, 2*C_out, C_in)

    acc = jnp.zeros((2 * c_out, tl), jnp.float32)
    for kk in range(k_taps):
        start = kk * dilation
        if stride == 1:
            xk = window[start:start + tl, :]                      # (TL, C_in)
        else:
            xk = window[start:start + (tl - 1) * stride + 1:stride, :]
        # out[o, l] += sum_c w[o, c] * x[l, c]  -> result is already lane-dense (2*C_out, TL).
        acc = acc + jnp.einsum("oc,lc->ol", w_all[kk], xk,
                               preferred_element_type=jnp.float32)
    acc = acc + b_ref[...]                                        # (2*C_out, 1) broadcast

    raw_lin = acc[:c_out]                                         # (C_out, TL)
    mask_lin = acc[c_out:]

    act = jnp.where(raw_lin >= 0.0, raw_lin, 0.2 * raw_lin)       # LeakyReLU(0.2)
    # sigmoid via EUP exp + approx reciprocal (clamped so exp never overflows to inf).
    e = jnp.exp(jnp.minimum(-mask_lin, 88.0))
    score = pl.reciprocal(1.0 + e, approx=True)
    gated = act * score

    # Partial BatchNorm statistics; mask out the length-padding lanes.
    lane = jax.lax.broadcasted_iota(jnp.int32, (1, tl), 1) + lt * tl
    valid = (lane < l_out).astype(jnp.float32)                    # (1, TL)
    g = gated * valid
    sum_ref[0, 0] = jnp.sum(g, axis=-1, keepdims=True)            # (C_out, 1)
    sq_ref[0, 0] = jnp.sum(g * g, axis=-1, keepdims=True)

    raw_ref[0] = act
    score_ref[0] = score


def _bn_apply_kernel(raw_ref, score_ref, scale_ref, shift_ref, out_ref):
    """Pass 2: out = (raw * score) * scale + shift  (scale/shift fold mean/var/gamma/beta)."""
    gated = raw_ref[0] * score_ref[0]                             # (C_out, TL)
    out_ref[0] = gated * scale_ref[...] + shift_ref[...]


@functools.partial(jax.jit,
                   static_argnames=("kernel_size", "stride", "padding", "dilation"))
def gated_deconv1d_forward(x, w_raw, b_raw, w_mask, b_mask, gamma, beta,
                           *, kernel_size, stride, padding, dilation):
    """x: (N, C_in, L) f32.  Returns (x_bn, raw, score), each (N, C_out, L_out) in NCL."""
    n, c_in, l = x.shape
    c_out = w_raw.shape[0]

    # ---- nearest x2 upsample (F.interpolate(scale_factor=2)), channel-last, padded ----
    # TODO(synk): fold the x2 nearest repeat into the kernel's window load to remove the
    # remaining 2x input materialization.
    l_up = 2 * l
    x_cl = jnp.repeat(jnp.transpose(x, (0, 2, 1)), 2, axis=1)      # (N, 2L, C_in)

    l_out = (l_up + 2 * padding - dilation * (kernel_size - 1) - 1) // stride + 1
    tl = min(512, _round_up(l_out, 128))                           # lane tile, multiple of 128
    n_lt = pl.cdiv(l_out, tl)
    l_out_pad = n_lt * tl

    win_w = (tl - 1) * stride + (kernel_size - 1) * dilation + 1   # window per output tile
    l_need = (n_lt - 1) * tl * stride + win_w                      # max padded index touched
    pad_right = max(0, l_need - padding - l_up)
    x_cl = jnp.pad(x_cl, ((0, 0), (padding, pad_right), (0, 0)))
    l_pad_total = x_cl.shape[1]

    # ---- fused conv weights: raw and mask stacked along the output-channel axis ----
    w_f = jnp.transpose(jnp.concatenate([w_raw, w_mask], axis=0), (2, 0, 1))  # (K, 2*C_out, C_in)
    b_f = jnp.concatenate([b_raw, b_mask]).reshape(2 * c_out, 1).astype(jnp.float32)

    kernel1 = functools.partial(
        _fused_gated_conv_kernel, c_out=c_out, k_taps=kernel_size, stride=stride,
        dilation=dilation, tl=tl, win_w=win_w, l_out=l_out)

    cparams = pltpu.CompilerParams(
        dimension_semantics=("parallel", "parallel"),
        vmem_limit_bytes=32 * 1024 * 1024)
    # TODO(synk): the whole per-batch upsampled row stays resident in VMEM (2*2L*C_in*4B
    # double-buffered); for very long sequences tile L with a halo'd manual DMA to respect
    # the 64 MiB physical VMEM on v7x.

    raw_p, score_p, sums, sqs = pl.pallas_call(
        kernel1,
        grid=(n, n_lt),
        in_specs=[
            pl.BlockSpec((1, l_pad_total, c_in), lambda bn, lt: (bn, 0, 0)),
            pl.BlockSpec((kernel_size, 2 * c_out, c_in), lambda bn, lt: (0, 0, 0)),
            pl.BlockSpec((2 * c_out, 1), lambda bn, lt: (0, 0)),
        ],
        out_specs=(
            pl.BlockSpec((1, c_out, tl), lambda bn, lt: (bn, 0, lt)),
            pl.BlockSpec((1, c_out, tl), lambda bn, lt: (bn, 0, lt)),
            pl.BlockSpec((1, 1, c_out, 1), lambda bn, lt: (bn, lt, 0, 0)),
            pl.BlockSpec((1, 1, c_out, 1), lambda bn, lt: (bn, lt, 0, 0)),
        ),
        out_shape=(
            jax.ShapeDtypeStruct((n, c_out, l_out_pad), jnp.float32),
            jax.ShapeDtypeStruct((n, c_out, l_out_pad), jnp.float32),
            jax.ShapeDtypeStruct((n, n_lt, c_out, 1), jnp.float32),
            jax.ShapeDtypeStruct((n, n_lt, c_out, 1), jnp.float32),
        ),
        compiler_params=cparams,
    )(x_cl, w_f, b_f)

    # ---- finalize BatchNorm1d statistics (tiny reduction, plain XLA) ----
    cnt = jnp.float32(n * l_out)
    s = jnp.sum(sums, axis=(0, 1))[:, 0]                           # (C_out,)
    ss = jnp.sum(sqs, axis=(0, 1))[:, 0]
    mean = s / cnt
    var = jnp.maximum(ss / cnt - mean * mean, 0.0)                 # biased variance
    inv = jax.lax.rsqrt(var + 1e-5)
    scale = (gamma * inv).reshape(c_out, 1).astype(jnp.float32)
    shift = (beta - mean * gamma * inv).reshape(c_out, 1).astype(jnp.float32)
    # TODO(synk): BatchNorm1d running_mean/running_var buffers are not updated (training-mode
    # batch statistics only), matching the stated forward semantics.

    xbn_p = pl.pallas_call(
        _bn_apply_kernel,
        grid=(n, n_lt),
        in_specs=[
            pl.BlockSpec((1, c_out, tl), lambda bn, lt: (bn, 0, lt)),
            pl.BlockSpec((1, c_out, tl), lambda bn, lt: (bn, 0, lt)),
            pl.BlockSpec((c_out, 1), lambda bn, lt: (0, 0)),
            pl.BlockSpec((c_out, 1), lambda bn, lt: (0, 0)),
        ],
        out_specs=pl.BlockSpec((1, c_out, tl), lambda bn, lt: (bn, 0, lt)),
        out_shape=jax.ShapeDtypeStruct((n, c_out, l_out_pad), jnp.float32),
        compiler_params=cparams,
    )(raw_p, score_p, scale, shift)

    if l_out_pad != l_out:
        xbn_p = xbn_p[:, :, :l_out]
        raw_p = raw_p[:, :, :l_out]
        score_p = score_p[:, :, :l_out]
    # PyTorch LeakyReLU is inplace=True, so the module's returned "raw" is the activated tensor.
    return xbn_p, raw_p, score_p


def _reference_forward(x, w_raw, b_raw, w_mask, b_mask, gamma, beta,
                       *, kernel_size, stride, padding, dilation):
    """Pure-JAX reference of the PyTorch module forward (for correctness checking)."""
    x_up = jnp.repeat(x, 2, axis=2)
    dn = jax.lax.conv_dimension_numbers(x_up.shape, w_raw.shape, ("NCH", "OIH", "NCH"))

    def conv(w, b):
        y = jax.lax.conv_general_dilated(
            x_up, w, window_strides=(stride,), padding=[(padding, padding)],
            rhs_dilation=(dilation,), dimension_numbers=dn)
        return y + b[None, :, None]

    raw = conv(w_raw, b_raw)
    mask = conv(w_mask, b_mask)
    act = jnp.where(raw >= 0.0, raw, 0.2 * raw)
    score = jax.nn.sigmoid(mask)
    g = act * score
    mean = jnp.mean(g, axis=(0, 2), keepdims=True)
    var = jnp.mean((g - mean) ** 2, axis=(0, 2), keepdims=True)
    xbn = (g - mean) * jax.lax.rsqrt(var + 1e-5) * gamma[None, :, None] + beta[None, :, None]
    return xbn, act, score


if __name__ == "__main__":
    # Module hyper-params (small, Conv1d defaults used here).
    in_channels, out_channels = 4, 8
    kernel_size, stride, padding, dilation = 3, 1, 1, 1
    batch, length = 2, 16

    key = jax.random.PRNGKey(0)
    k_x, k_wr, k_br, k_wm, k_bm = jax.random.split(key, 5)

    fan_in = in_channels * kernel_size
    kaiming_std = (2.0 / fan_in) ** 0.5            # kaiming_normal_, fan_in, leaky_relu gain
    bias_bound = 1.0 / (fan_in ** 0.5)             # PyTorch Conv1d default bias init

    x = jax.random.normal(k_x, (batch, in_channels, length), dtype=jnp.float32)
    w_raw = kaiming_std * jax.random.normal(
        k_wr, (out_channels, in_channels, kernel_size), dtype=jnp.float32)
    b_raw = jax.random.uniform(
        k_br, (out_channels,), minval=-bias_bound, maxval=bias_bound, dtype=jnp.float32)
    w_mask = kaiming_std * jax.random.normal(
        k_wm, (out_channels, in_channels, kernel_size), dtype=jnp.float32)
    b_mask = jax.random.uniform(
        k_bm, (out_channels,), minval=-bias_bound, maxval=bias_bound, dtype=jnp.float32)
    gamma = jnp.ones((out_channels,), dtype=jnp.float32)   # BatchNorm1d default affine init
    beta = jnp.zeros((out_channels,), dtype=jnp.float32)

    x_bn, raw, score = gated_deconv1d_forward(
        x, w_raw, b_raw, w_mask, b_mask, gamma, beta,
        kernel_size=kernel_size, stride=stride, padding=padding, dilation=dilation)
    jax.block_until_ready((x_bn, raw, score))

    expected = (batch, out_channels, 2 * length)   # upsample x2, k=3/pad=1/stride=1 keeps length
    assert x_bn.shape == expected and raw.shape == expected and score.shape == expected

    ref_bn, ref_raw, ref_score = _reference_forward(
        x, w_raw, b_raw, w_mask, b_mask, gamma, beta,
        kernel_size=kernel_size, stride=stride, padding=padding, dilation=dilation)
    for got, want in ((x_bn, ref_bn), (raw, ref_raw), (score, ref_score)):
        assert bool(jnp.all(jnp.isfinite(got)))
        assert bool(jnp.allclose(got, want, rtol=2e-2, atol=2e-2))

    print("KERNEL_OK")
</pallas_src>

<mosaic_0001>
module attributes {stable_mosaic.version = 11 : i64} {
  func.func @_fused_gated_conv_kernel(%arg0: i32, %arg1: i32, %arg2: memref<1x130x4xf32, #tpu.memory_space<vmem>>, %arg3: memref<3x16x4xf32, #tpu.memory_space<vmem>>, %arg4: memref<16x1xf32, #tpu.memory_space<vmem>>, %arg5: memref<1x8x128xf32, #tpu.memory_space<vmem>>, %arg6: memref<1x8x128xf32, #tpu.memory_space<vmem>>, %arg7: memref<1x1x8x1xf32, #tpu.memory_space<vmem>>, %arg8: memref<1x1x8x1xf32, #tpu.memory_space<vmem>>) attributes {dimension_semantics = [#tpu.dimension_semantics<parallel>, #tpu.dimension_semantics<parallel>], iteration_bounds = array<i64: 2, 1>, scalar_prefetch = 0 : i64, scratch_operands = 0 : i64, tpu.core_type = #tpu.core_type<tc>, window_params = [{transform_indices = @transform_0, window_bounds = array<i64: 1, 130, 4>}, {pipeline_mode = #tpu.pipeline_mode<synchronous>, transform_indices = @transform_1, window_bounds = array<i64: 3, 16, 4>}, {pipeline_mode = #tpu.pipeline_mode<synchronous>, transform_indices = @transform_2, window_bounds = array<i64: 16, 1>}, {transform_indices = @transform_3, window_bounds = array<i64: 1, 8, 128>}, {transform_indices = @transform_4, window_bounds = array<i64: 1, 8, 128>}, {transform_indices = @transform_5, window_bounds = array<i64: 1, 1, 8, 1>}, {transform_indices = @transform_6, window_bounds = array<i64: 1, 1, 8, 1>}]} {
    %c128_i32 = arith.constant 128 : i32
    %0 = arith.muli %arg1, %c128_i32 : i32
    %1 = tpu.assume_multiple %0, 8 : i32
    %c0 = arith.constant 0 : index
    %2 = arith.index_cast %1 : i32 to index
    %c0_0 = arith.constant 0 : index
    %3 = vector.load %arg2[%c0, %2, %c0_0] : memref<1x130x4xf32, #tpu.memory_space<vmem>>, vector<1x130x4xf32>
    %4 = vector.shape_cast %3 : vector<1x130x4xf32> to vector<130x4xf32>
    %c0_1 = arith.constant 0 : index
    %c0_2 = arith.constant 0 : index
    %c0_3 = arith.constant 0 : index
    %5 = vector.load %arg3[%c0_1, %c0_2, %c0_3] : memref<3x16x4xf32, #tpu.memory_space<vmem>>, vector<3x16x4xf32>
    %cst = arith.constant 0.000000e+00 : f32
    %6 = vector.broadcast %cst : f32 to vector<16x128xf32>
    %7 = vector.extract_strided_slice %4 {offsets = [0, 0], sizes = [128, 4], strides = [1, 1]} : vector<130x4xf32> to vector<128x4xf32>
    %8 = vector.extract_strided_slice %5 {offsets = [0, 0, 0], sizes = [1, 16, 4], strides = [1, 1, 1]} : vector<3x16x4xf32> to vector<1x16x4xf32>
    %9 = vector.shape_cast %8 : vector<1x16x4xf32> to vector<16x4xf32>
    "tpu.trace_start"() <{level = 10 : i32, message = "oc,lc->ol"}> : () -> ()
    %cst_4 = arith.constant dense<0.000000e+00> : vector<16x128xf32>
    %10 = tpu.matmul %9, %7, %cst_4 {dimension_numbers = #tpu.dot_dimension_numbers<[1], [1], [0], [0], [0, 0, 1, 0], [], []>} : vector<16x4xf32>, vector<128x4xf32>, vector<16x128xf32> -> vector<16x128xf32>
    "tpu.trace_stop"() : () -> ()
    %11 = arith.addf %6, %10 : vector<16x128xf32>
    %12 = vector.extract_strided_slice %4 {offsets = [1, 0], sizes = [128, 4], strides = [1, 1]} : vector<130x4xf32> to vector<128x4xf32>
    %13 = vector.extract_strided_slice %5 {offsets = [1, 0, 0], sizes = [1, 16, 4], strides = [1, 1, 1]} : vector<3x16x4xf32> to vector<1x16x4xf32>
    %14 = vector.shape_cast %13 : vector<1x16x4xf32> to vector<16x4xf32>
    "tpu.trace_start"() <{level = 10 : i32, message = "oc,lc->ol"}> : () -> ()
    %cst_5 = arith.constant dense<0.000000e+00> : vector<16x128xf32>
    %15 = tpu.matmul %14, %12, %cst_5 {dimension_numbers = #tpu.dot_dimension_numbers<[1], [1], [0], [0], [0, 0, 1, 0], [], []>} : vector<16x4xf32>, vector<128x4xf32>, vector<16x128xf32> -> vector<16x128xf32>
    "tpu.trace_stop"() : () -> ()
    %16 = arith.addf %11, %15 : vector<16x128xf32>
    %17 = vector.extract_strided_slice %4 {offsets = [2, 0], sizes = [128, 4], strides = [1, 1]} : vector<130x4xf32> to vector<128x4xf32>
    %18 = vector.extract_strided_slice %5 {offsets = [2, 0, 0], sizes = [1, 16, 4], strides = [1, 1, 1]} : vector<3x16x4xf32> to vector<1x16x4xf32>
    %19 = vector.shape_cast %18 : vector<1x16x4xf32> to vector<16x4xf32>
    "tpu.trace_start"() <{level = 10 : i32, message = "oc,lc->ol"}> : () -> ()
    %cst_6 = arith.constant dense<0.000000e+00> : vector<16x128xf32>
    %20 = tpu.matmul %19, %17, %cst_6 {dimension_numbers = #tpu.dot_dimension_numbers<[1], [1], [0], [0], [0, 0, 1, 0], [], []>} : vector<16x4xf32>, vector<128x4xf32>, vector<16x128xf32> -> vector<16x128xf32>
    "tpu.trace_stop"() : () -> ()
    %21 = arith.addf %16, %20 : vector<16x128xf32>
    %c0_7 = arith.constant 0 : index
    %c0_8 = arith.constant 0 : index
    %22 = vector.load %arg4[%c0_7, %c0_8] : memref<16x1xf32, #tpu.memory_space<vmem>>, vector<16x1xf32>
    %23 = vector.broadcast %22 : vector<16x1xf32> to vector<16x128xf32>
    %24 = arith.addf %21, %23 : vector<16x128xf32>
    %25 = vector.extract_strided_slice %24 {offsets = [0, 0], sizes = [8, 128], strides = [1, 1]} : vector<16x128xf32> to vector<8x128xf32>
    %26 = vector.extract_strided_slice %24 {offsets = [8, 0], sizes = [8, 128], strides = [1, 1]} : vector<16x128xf32> to vector<8x128xf32>
    %cst_9 = arith.constant 0.000000e+00 : f32
    %27 = vector.broadcast %cst_9 : f32 to vector<8x128xf32>
    %28 = arith.cmpf oge, %25, %27 : vector<8x128xf32>
    %cst_10 = arith.constant 2.000000e-01 : f32
    %29 = vector.broadcast %cst_10 : f32 to vector<8x128xf32>
    %30 = arith.mulf %29, %25 : vector<8x128xf32>
    %31 = arith.select %28, %25, %30 : vector<8x128xi1>, vector<8x128xf32>
    %cst_11 = arith.constant 0.000000e+00 : f32
    %32 = vector.broadcast %cst_11 : f32 to vector<8x128xf32>
    %33 = arith.subf %32, %26 : vector<8x128xf32>
    %cst_12 = arith.constant 8.800000e+01 : f32
    %34 = vector.broadcast %cst_12 : f32 to vector<8x128xf32>
    %35 = arith.minimumf %33, %34 : vector<8x128xf32>
    %36 = math.exp %35 : vector<8x128xf32>
    %cst_13 = arith.constant 1.000000e+00 : f32
    %37 = vector.broadcast %cst_13 : f32 to vector<8x128xf32>
    %38 = arith.addf %37, %36 : vector<8x128xf32>
    %39 = tpu.reciprocal %38 {approx = true} : vector<8x128xf32> -> vector<8x128xf32>
    %40 = arith.mulf %31, %39 : vector<8x128xf32>
    %41 = tpu.iota {dimensions = array<i32: 1>} : vector<1x128xi32>
    %c128_i32_14 = arith.constant 128 : i32
    %42 = arith.muli %arg1, %c128_i32_14 : i32
    %43 = vector.broadcast %42 : i32 to vector<1x128xi32>
    %44 = arith.addi %41, %43 : vector<1x128xi32>
    %c32_i32 = arith.constant 32 : i32
    %45 = vector.broadcast %c32_i32 : i32 to vector<1x128xi32>
    %46 = arith.cmpi slt, %44, %45 : vector<1x128xi32>
    %47 = arith.extui %46 : vector<1x128xi1> to vector<1x128xi32>
    %48 = arith.sitofp %47 : vector<1x128xi32> to vector<1x128xf32>
    %49 = vector.broadcast %48 : vector<1x128xf32> to vector<8x128xf32>
    %50 = arith.mulf %40, %49 : vector<8x128xf32>
    %cst_15 = arith.constant dense<0.000000e+00> : vector<8xf32>
    %51 = vector.multi_reduction <add>, %50, %cst_15 [1] : vector<8x128xf32> to vector<8xf32>
    %52 = vector.shape_cast %51 : vector<8xf32> to vector<8x1xf32>
    %c0_16 = arith.constant 0 : index
    %c0_17 = arith.constant 0 : index
    %c0_18 = arith.constant 0 : index
    %c0_19 = arith.constant 0 : index
    %53 = vector.load %arg7[%c0_16, %c0_17, %c0_18, %c0_19] : memref<1x1x8x1xf32, #tpu.memory_space<vmem>>, vector<1x1x8x1xf32>
    %54 = vector.shape_cast %53 : vector<1x1x8x1xf32> to vector<8x1xf32>
    %55 = vector.shape_cast %52 : vector<8x1xf32> to vector<1x1x8x1xf32>
    tpu.vector_store %arg7[%c0_16, %c0_17, %c0_18, %c0_19], %55 {strides = array<i32>} : memref<1x1x8x1xf32, #tpu.memory_space<vmem>>, vector<1x1x8x1xf32>,
    %56 = arith.mulf %50, %50 : vector<8x128xf32>
    %cst_20 = arith.constant dense<0.000000e+00> : vector<8xf32>
    %57 = vector.multi_reduction <add>, %56, %cst_20 [1] : vector<8x128xf32> to vector<8xf32>
    %58 = vector.shape_cast %57 : vector<8xf32> to vector<8x1xf32>
    %c0_21 = arith.constant 0 : index
    %c0_22 = arith.constant 0 : index
    %c0_23 = arith.constant 0 : index
    %c0_24 = arith.constant 0 : index
    %59 = vector.load %arg8[%c0_21, %c0_22, %c0_23, %c0_24] : memref<1x1x8x1xf32, #tpu.memory_space<vmem>>, vector<1x1x8x1xf32>
    %60 = vector.shape_cast %59 : vector<1x1x8x1xf32> to vector<8x1xf32>
    %61 = vector.shape_cast %58 : vector<8x1xf32> to vector<1x1x8x1xf32>
    tpu.vector_store %arg8[%c0_21, %c0_22, %c0_23, %c0_24], %61 {strides = array<i32>} : memref<1x1x8x1xf32, #tpu.memory_space<vmem>>, vector<1x1x8x1xf32>,
    %c0_25 = arith.constant 0 : index
    %c0_26 = arith.constant 0 : index
    %c0_27 = arith.constant 0 : index
    %62 = vector.load %arg5[%c0_25, %c0_26, %c0_27] : memref<1x8x128xf32, #tpu.memory_space<vmem>>, vector<1x8x128xf32>
    %63 = vector.shape_cast %62 : vector<1x8x128xf32> to vector<8x128xf32>
    %64 = vector.shape_cast %31 : vector<8x128xf32> to vector<1x8x128xf32>
    tpu.vector_store %arg5[%c0_25, %c0_26, %c0_27], %64 {strides = array<i32>} : memref<1x8x128xf32, #tpu.memory_space<vmem>>, vector<1x8x128xf32>,
    %c0_28 = arith.constant 0 : index
    %c0_29 = arith.constant 0 : index
    %c0_30 = arith.constant 0 : index
    %65 = vector.load %arg6[%c0_28, %c0_29, %c0_30] : memref<1x8x128xf32, #tpu.memory_space<vmem>>, vector<1x8x128xf32>
    %66 = vector.shape_cast %65 : vector<1x8x128xf32> to vector<8x128xf32>
    %67 = vector.shape_cast %39 : vector<8x128xf32> to vector<1x8x128xf32>
    tpu.vector_store %arg6[%c0_28, %c0_29, %c0_30], %67 {strides = array<i32>} : memref<1x8x128xf32, #tpu.memory_space<vmem>>, vector<1x8x128xf32>,
    return
  }
  func.func @transform_0(%arg0: i32, %arg1: i32) -> (i32, i32, i32) {
    %c0_i32 = arith.constant 0 : i32
    %c0_i32_0 = arith.constant 0 : i32
    %c0_i32_1 = arith.constant 0 : i32
    return %arg0, %c0_i32, %c0_i32_0 : i32, i32, i32
  }
  func.func @transform_1(%arg0: i32, %arg1: i32) -> (i32, i32, i32) {
    %c0_i32 = arith.constant 0 : i32
    %c0_i32_0 = arith.constant 0 : i32
    %c0_i32_1 = arith.constant 0 : i32
    %c0_i32_2 = arith.constant 0 : i32
    return %c0_i32, %c0_i32_0, %c0_i32_1 : i32, i32, i32
  }
  func.func @transform_2(%arg0: i32, %arg1: i32) -> (i32, i32) {
    %c0_i32 = arith.constant 0 : i32
    %c0_i32_0 = arith.constant 0 : i32
    %c0_i32_1 = arith.constant 0 : i32
    return %c0_i32, %c0_i32_0 : i32, i32
  }
  func.func @transform_3(%arg0: i32, %arg1: i32) -> (i32, i32, i32) {
    %c0_i32 = arith.constant 0 : i32
    %c0_i32_0 = arith.constant 0 : i32
    return %arg0, %c0_i32, %arg1 : i32, i32, i32
  }
  func.func @transform_4(%arg0: i32, %arg1: i32) -> (i32, i32, i32) {
    %c0_i32 = arith.constant 0 : i32
    %c0_i32_0 = arith.constant 0 : i32
    return %arg0, %c0_i32, %arg1 : i32, i32, i32
  }
  func.func @transform_5(%arg0: i32, %arg1: i32) -> (i32, i32, i32, i32) {
    %c0_i32 = arith.constant 0 : i32
    %c0_i32_0 = arith.constant 0 : i32
    %c0_i32_1 = arith.constant 0 : i32
    return %arg0, %arg1, %c0_i32, %c0_i32_0 : i32, i32, i32, i32
  }
  func.func @transform_6(%arg0: i32, %arg1: i32) -> (i32, i32, i32, i32) {
    %c0_i32 = arith.constant 0 : i32
    %c0_i32_0 = arith.constant 0 : i32
    %c0_i32_1 = arith.constant 0 : i32
    return %arg0, %arg1, %c0_i32, %c0_i32_0 : i32, i32, i32, i32
  }
}

module attributes {stable_mosaic.version = 11 : i64} {
  func.func @_bn_apply_kernel(%arg0: i32, %arg1: i32, %arg2: memref<1x8x128xf32, #tpu.memory_space<vmem>>, %arg3: memref<1x8x128xf32, #tpu.memory_space<vmem>>, %arg4: memref<8x1xf32, #tpu.memory_space<vmem>>, %arg5: memref<8x1xf32, #tpu.memory_space<vmem>>, %arg6: memref<1x8x128xf32, #tpu.memory_space<vmem>>) attributes {dimension_semantics = [#tpu.dimension_semantics<parallel>, #tpu.dimension_semantics<parallel>], iteration_bounds = array<i64: 2, 1>, scalar_prefetch = 0 : i64, scratch_operands = 0 : i64, tpu.core_type = #tpu.core_type<tc>, window_params = [{transform_indices = @transform_0, window_bounds = array<i64: 1, 8, 128>}, {transform_indices = @transform_1, window_bounds = array<i64: 1, 8, 128>}, {pipeline_mode = #tpu.pipeline_mode<synchronous>, transform_indices = @transform_2, window_bounds = array<i64: 8, 1>}, {pipeline_mode = #tpu.pipeline_mode<synchronous>, transform_indices = @transform_3, window_bounds = array<i64: 8, 1>}, {transform_indices = @transform_4, window_bounds = array<i64: 1, 8, 128>}]} {
    %c0 = arith.constant 0 : index
    %c0_0 = arith.constant 0 : index
    %c0_1 = arith.constant 0 : index
    %0 = vector.load %arg2[%c0, %c0_0, %c0_1] : memref<1x8x128xf32, #tpu.memory_space<vmem>>, vector<1x8x128xf32>
    %1 = vector.shape_cast %0 : vector<1x8x128xf32> to vector<8x128xf32>
    %c0_2 = arith.constant 0 : index
    %c0_3 = arith.constant 0 : index
    %c0_4 = arith.constant 0 : index
    %2 = vector.load %arg3[%c0_2, %c0_3, %c0_4] : memref<1x8x128xf32, #tpu.memory_space<vmem>>, vector<1x8x128xf32>
    %3 = vector.shape_cast %2 : vector<1x8x128xf32> to vector<8x128xf32>
    %4 = arith.mulf %1, %3 : vector<8x128xf32>
    %c0_5 = arith.constant 0 : index
    %c0_6 = arith.constant 0 : index
    %5 = vector.load %arg4[%c0_5, %c0_6] : memref<8x1xf32, #tpu.memory_space<vmem>>, vector<8x1xf32>
    %6 = vector.broadcast %5 : vector<8x1xf32> to vector<8x128xf32>
    %7 = arith.mulf %4, %6 : vector<8x128xf32>
    %c0_7 = arith.constant 0 : index
    %c0_8 = arith.constant 0 : index
    %8 = vector.load %arg5[%c0_7, %c0_8] : memref<8x1xf32, #tpu.memory_space<vmem>>, vector<8x1xf32>
    %9 = vector.broadcast %8 : vector<8x1xf32> to vector<8x128xf32>
    %10 = arith.addf %7, %9 : vector<8x128xf32>
    %c0_9 = arith.constant 0 : index
    %c0_10 = arith.constant 0 : index
    %c0_11 = arith.constant 0 : index
    %11 = vector.load %arg6[%c0_9, %c0_10, %c0_11] : memref<1x8x128xf32, #tpu.memory_space<vmem>>, vector<1x8x128xf32>
    %12 = vector.shape_cast %11 : vector<1x8x128xf32> to vector<8x128xf32>
    %13 = vector.shape_cast %10 : vector<8x128xf32> to vector<1x8x128xf32>
    tpu.vector_store %arg6[%c0_9, %c0_10, %c0_11], %13 {strides = array<i32>} : memref<1x8x128xf32, #tpu.memory_space<vmem>>, vector<1x8x128xf32>,
    return
  }
  func.func @transform_0(%arg0: i32, %arg1: i32) -> (i32, i32, i32) {
    %c0_i32 = arith.constant 0 : i32
    %c0_i32_0 = arith.constant 0 : i32
    return %arg0, %c0_i32, %arg1 : i32, i32, i32
  }
  func.func @transform_1(%arg0: i32, %arg1: i32) -> (i32, i32, i32) {
    %c0_i32 = arith.constant 0 : i32
    %c0_i32_0 = arith.constant 0 : i32
    return %arg0, %c0_i32, %arg1 : i32, i32, i32
  }
  func.func @transform_2(%arg0: i32, %arg1: i32) -> (i32, i32) {
    %c0_i32 = arith.constant 0 : i32
    %c0_i32_0 = arith.constant 0 : i32
    %c0_i32_1 = arith.constant 0 : i32
    return %c0_i32, %c0_i32_0 : i32, i32
  }
  func.func @transform_3(%arg0: i32, %arg1: i32) -> (i32, i32) {
    %c0_i32 = arith.constant 0 : i32
    %c0_i32_0 = arith.constant 0 : i32
    %c0_i32_1 = arith.constant 0 : i32
    return %c0_i32, %c0_i32_0 : i32, i32
  }
  func.func @transform_4(%arg0: i32, %arg1: i32) -> (i32, i32, i32) {
    %c0_i32 = arith.constant 0 : i32
    %c0_i32_0 = arith.constant 0 : i32
    return %arg0, %c0_i32, %arg1 : i32, i32, i32
  }
}

</mosaic_0001>

<llo_original>
// kernel: gated_deconv1d_forward.3
$region0: #{gated_deconv1d_forward.3}
  #allocation0 [shape = 'u32[]', space=smem, size = 0x4, offset = 0x4, fixed_abs, tag = 'smem constant byte address 0x4 - core index']
  #allocation1 [shape = 'u32[144,128]{1,0:T(1,128)}', space=vmem, size = 0x12000, scoped, tag = 'internal scratch']
  %s0 = inlined_call_operand.vmem [shape: f32[2,8,128], index: 0, kind: input, shape index: {}]
  %s1 = inlined_call_operand.vmem [shape: f32[2,8,128], index: 1, kind: input, shape index: {}]
  %s2 = inlined_call_operand.vmem [shape: f32[8,1], index: 2, kind: input, shape index: {}]
  %s3 = inlined_call_operand.vmem [shape: f32[8,1], index: 3, kind: input, shape index: {}]
  %s4 = inlined_call_operand.hbm [shape: f32[2,8,128], index: 4, kind: output, shape index: {}]
  %s5 = sld [smem:[#allocation0]]
  $region49: #{gated_deconv1d_forward.3} parent=0
    _
  %s7 = ssub.s32 1, %s5
  %s8 = scalar_select 0, %s7, %s5
  $region1: #{gated_deconv1d_forward.3} parent=0
    #allocation2 [shape = 'u8[8192]{0}', space=vmem, size = 0x2000, scoped, tag = 'output window, operand 0']
    #allocation3 [shape = 's32[2]{0}', space=sflag, size = 0x8, scoped, tag = 'scoped memory for gated_deconv1d_forward.3']
    %9 = vsyncpa [#allocation3], 0
    %s10 = scalar_lea.sflag [#allocation3], 1
    %11 = vsyncpa %s10, 0
    loop: start=0, step=1, limit=4
    $region2: #{gated_deconv1d_forward.3} parent=1 // loop_pre_header
      _
    $region3: #{gated_deconv1d_forward.3} parent=1 // loop_header
      %s13 = sphi 0, %s17
      %p14 = scmp.ge.s32.totalorder %s13, 4
      %s20 = sphi 0, %s32
      %s21 = sphi 0, %s28
      %s22 = sphi 0, %s20
      %s23 = sphi 0, %s21
      %s24 = sphi 0, %s22
      %s25 = sphi 0, %s23
      %s37 = sphi 0, %s39
      %s40 = sphi 0, %s37
      %s41 = sphi 0, %s40
      %s57 = sphi 0, %s41
      %s65 = sphi 0, %s67
      %s68 = sphi 0, %s65
      %s69 = sphi 0, %s68
      %s85 = sphi 0, %s69
      %s89 = sphi 0, %s89
      %s91 = sphi 0, %s89
      %s92 = sphi 0, %s91
      %s106 = sphi 0, %s92
      %s110 = sphi 0, %s110
      %s112 = sphi 0, %s110
      %s113 = sphi 0, %s112
      %s127 = sphi 0, %s113
      %s135 = sphi 0, %s137
      %s138 = sphi 0, %s135
      %s139 = sphi 0, %s138
      %s155 = sphi 0, %s139
    $region4: #{gated_deconv1d_forward.3} parent=1 // loop_header_branch
      %16 = sbr.rel (%p14) target = $region8
    $region5: #{gated_deconv1d_forward.3} parent=1 // loop_body
      %s18 = ssub.s32 %s13, 1
      %s19 = ssub.s32 %s13, 2
      %s26 = sadd.s32 1, %s21
      %p27 = scmp.ge.s32.totalorder %s26, 1
      %s28 = scalar_select %p27, 0, %s26
      %s29 = sadd.s32 1, %s20
      %s30 = scalar_select %p27, %s29, %s20
      %p31 = scmp.ge.s32.totalorder %s30, 2
      %s32 = scalar_select %p31, 0, %s30
      %s33 = ssub.s32 %s20, %s32
      %s34 = ssub.s32 %s21, %s28
      %s35 = sor.u32 %s33, %s34
      %p36 = scmp.eq.s32.totalorder %s35, 0
      %s38 = sadd.s32 %s37, 1
      %s39 = scalar_select %p36, %s37, %s38
      %p42 = pneg %p36
      %p43 = scmp.eq.s32.totalorder %s13, 1
      %p44 = por %p42, %p43
      %p45 = scmp.ne.s32.totalorder %s37, %s40
      %p46 = scmp.eq.s32.totalorder %s13, 0
      %p47 = por %p45, %p46
      %p48 = scmp.ne.s32.totalorder %s37, %s40
      %p49 = scmp.eq.s32.totalorder %s18, 1
      %p50 = por %p48, %p49
      %p51 = scmp.ne.s32.totalorder %s40, %s41
      %p52 = scmp.eq.s32.totalorder %s18, 0
      %p53 = por %p51, %p52
      %p54 = scmp.ne.s32.totalorder %s40, %s41
      %p55 = scmp.eq.s32.totalorder %s19, 1
      %p56 = por %p54, %p55
      %p58 = scmp.ne.s32.totalorder %s41, %s57
      %p59 = scmp.eq.s32.totalorder %s19, 0
      %p60 = por %p58, %p59
      %s61 = ssub.s32 %s20, %s32
      %s62 = ssub.s32 %s21, %s28
      %s63 = sor.u32 %s61, %s62
      %p64 = scmp.eq.s32.totalorder %s63, 0
      %s66 = sadd.s32 %s65, 1
      %s67 = scalar_select %p64, %s65, %s66
      %p70 = pneg %p64
      %p71 = scmp.eq.s32.totalorder %s13, 1
      %p72 = por %p70, %p71
      %p73 = scmp.ne.s32.totalorder %s65, %s68
      %p74 = scmp.eq.s32.totalorder %s13, 0
      %p75 = por %p73, %p74
      %p76 = scmp.ne.s32.totalorder %s65, %s68
      %p77 = scmp.eq.s32.totalorder %s18, 1
      %p78 = por %p76, %p77
      %p79 = scmp.ne.s32.totalorder %s68, %s69
      %p80 = scmp.eq.s32.totalorder %s18, 0
      %p81 = por %p79, %p80
      %p82 = scmp.ne.s32.totalorder %s68, %s69
      %p83 = scmp.eq.s32.totalorder %s19, 1
      %p84 = por %p82, %p83
      %p86 = scmp.ne.s32.totalorder %s69, %s85
      %p87 = scmp.eq.s32.totalorder %s19, 0
      %p88 = por %p86, %p87
      %s90 = sadd.s32 %s89, 1
      %p93 = scmp.eq.s32.totalorder %s13, 1
      %p94 = scmp.ne.s32.totalorder %s89, %s91
      %p95 = scmp.eq.s32.totalorder %s13, 0
      %p96 = por %p94, %p95
      %p97 = scmp.ne.s32.totalorder %s89, %s91
      %p98 = scmp.eq.s32.totalorder %s18, 1
      %p99 = por %p97, %p98
      %p100 = scmp.ne.s32.totalorder %s91, %s92
      %p101 = scmp.eq.s32.totalorder %s18, 0
      %p102 = por %p100, %p101
      %p103 = scmp.ne.s32.totalorder %s91, %s92
      %p104 = scmp.eq.s32.totalorder %s19, 1
      %p105 = por %p103, %p104
      %p107 = scmp.ne.s32.totalorder %s92, %s106
      %p108 = scmp.eq.s32.totalorder %s19, 0
      %p109 = por %p107, %p108
      %s111 = sadd.s32 %s110, 1
      %p114 = scmp.eq.s32.totalorder %s13, 1
      %p115 = scmp.ne.s32.totalorder %s110, %s112
      %p116 = scmp.eq.s32.totalorder %s13, 0
      %p117 = por %p115, %p116
      %p118 = scmp.ne.s32.totalorder %s110, %s112
      %p119 = scmp.eq.s32.totalorder %s18, 1
      %p120 = por %p118, %p119
      %p121 = scmp.ne.s32.totalorder %s112, %s113
      %p122 = scmp.eq.s32.totalorder %s18, 0
      %p123 = por %p121, %p122
      %p124 = scmp.ne.s32.totalorder %s112, %s113
      %p125 = scmp.eq.s32.totalorder %s19, 1
      %p126 = por %p124, %p125
      %p128 = scmp.ne.s32.totalorder %s113, %s127
      %p129 = scmp.eq.s32.totalorder %s19, 0
      %p130 = por %p128, %p129
      %s131 = ssub.s32 %s20, %s32
      %s132 = ssub.s32 %s21, %s28
      %s133 = sor.u32 %s131, %s132
      %p134 = scmp.eq.s32.totalorder %s133, 0
      %s136 = sadd.s32 %s135, 1
      %s137 = scalar_select %p134, %s135, %s136
      %p140 = pneg %p134
      %p141 = scmp.eq.s32.totalorder %s13, 1
      %p142 = por %p140, %p141
      %p143 = scmp.ne.s32.totalorder %s135, %s138
      %p144 = scmp.eq.s32.totalorder %s13, 0
      %p145 = por %p143, %p144
      %p146 = scmp.ne.s32.totalorder %s135, %s138
      %p147 = scmp.eq.s32.totalorder %s18, 1
      %p148 = por %p146, %p147
      %p149 = scmp.ne.s32.totalorder %s138, %s139
      %p150 = scmp.eq.s32.totalorder %s18, 0
      %p151 = por %p149, %p150
      %p152 = scmp.ne.s32.totalorder %s138, %s139
      %p153 = scmp.eq.s32.totalorder %s19, 1
      %p154 = por %p152, %p153
      %p156 = scmp.ne.s32.totalorder %s139, %s155
      %p157 = scmp.eq.s32.totalorder %s19, 0
      %p158 = por %p156, %p157
      %p159 = scmp.le.s32.totalorder 1, %s13
      %p160 = scmp.lt.s32.totalorder %s13, 3
      %p161 = pnand %p159, %p160
      %p162 = pneg %p161
      // Predicated region
      $region9: #{gated_deconv1d_forward.3} parent=5 // pred_check
        _
      $region10: #{gated_deconv1d_forward.3} parent=5 // pred_check_branch
        %164 = sbr.rel (%p161) target = $region12
      $region11: #{gated_deconv1d_forward.3} parent=5 // pred_region
        %s165 = ssub.s32 %s13, 1
        // Predicated region
        $region13: #{gated_deconv1d_forward.3} parent=11 // pred_check
          %p166 = pneg %p102
        $region14: #{gated_deconv1d_forward.3} parent=11 // pred_check_branch
          %168 = sbr.rel (%p166) target = $region16
        $region15: #{gated_deconv1d_forward.3} parent=11 // pred_region
          _
        $region16: #{gated_deconv1d_forward.3} parent=11 // pred_fallthru
          _
        // Predicated region
        $region17: #{gated_deconv1d_forward.3} parent=11 // pred_check
          %p169 = pneg %p123
        $region18: #{gated_deconv1d_forward.3} parent=11 // pred_check_branch
          %171 = sbr.rel (%p169) target = $region20
        $region19: #{gated_deconv1d_forward.3} parent=11 // pred_region
          _
        $region20: #{gated_deconv1d_forward.3} parent=11 // pred_fallthru
          _
      $region12: #{gated_deconv1d_forward.3} parent=5 // pred_fallthru
        _
      %p172 = scmp.lt.s32.totalorder %s13, 2
      // Predicated region
      $region21: #{gated_deconv1d_forward.3} parent=5 // pred_check
        %p173 = pneg %p172
      $region22: #{gated_deconv1d_forward.3} parent=5 // pred_check_branch
        %175 = sbr.rel (%p173) target = $region24
      $region23: #{gated_deconv1d_forward.3} parent=5 // pred_region
        // Predicated region
        $region25: #{gated_deconv1d_forward.3} parent=23 // pred_check
          %p176 = pneg %p47
        $region26: #{gated_deconv1d_forward.3} parent=23 // pred_check_branch
          %178 = sbr.rel (%p176) target = $region28
        $region27: #{gated_deconv1d_forward.3} parent=23 // pred_region
          %p179 = scmp.lt.s32.totalorder %s20, 1
          %s180 = scalar_select %p179, %s20, 1
          %p181 = scmp.lt.s32.totalorder %s21, 0
          %s182 = scalar_select %p181, %s21, 0
          %s183 = sadd.s32 %s182, %s180
          %s184 = smul.addr %s183, 8
          %s185 = scalar_lea.vmem %s0, %s184
        $region28: #{gated_deconv1d_forward.3} parent=23 // pred_fallthru
          _
        // Predicated region
        $region29: #{gated_deconv1d_forward.3} parent=23 // pred_check
          %p186 = pneg %p75
        $region30: #{gated_deconv1d_forward.3} parent=23 // pred_check_branch
          %188 = sbr.rel (%p186) target = $region32
        $region31: #{gated_deconv1d_forward.3} parent=23 // pred_region
          %p189 = scmp.lt.s32.totalorder %s20, 1
          %s190 = scalar_select %p189, %s20, 1
          %p191 = scmp.lt.s32.totalorder %s21, 0
          %s192 = scalar_select %p191, %s21, 0
          %s193 = sadd.s32 %s192, %s190
          %s194 = smul.addr %s193, 8
          %s195 = scalar_lea.vmem %s1, %s194
        $region32: #{gated_deconv1d_forward.3} parent=23 // pred_fallthru
          _
      $region24: #{gated_deconv1d_forward.3} parent=5 // pred_fallthru
        _
      %p196 = scmp.le.s32.totalorder 1, %s13
      %p197 = scmp.lt.s32.totalorder %s13, 3
      %p198 = pnand %p196, %p197
      %p199 = pneg %p198
      // Predicated region
      $region33: #{gated_deconv1d_forward.3} parent=5 // pred_check
        _
      $region34: #{gated_deconv1d_forward.3} parent=5 // pred_check_branch
        %201 = sbr.rel (%p198) target = $region36
      $region35: #{gated_deconv1d_forward.3} parent=5 // pred_region
        %s202 = ssub.s32 %s13, 1
        %p203 = scmp.lt.s32.totalorder %s22, 1
        %s204 = scalar_select %p203, %s22, 1
        %p205 = scmp.lt.s32.totalorder %s23, 0
        %s206 = scalar_select %p205, %s23, 0
        %s207 = sadd.s32 %s206, %s204
        %s208 = smul.addr %s207, 8
        %s209 = scalar_lea.vmem %s0, %s208
        %p210 = pneg %p53
        %p211 = pneg %p50
        %p212 = scmp.lt.s32.totalorder %s22, 1
        %s213 = scalar_select %p212, %s22, 1
        %p214 = scmp.lt.s32.totalorder %s23, 0
        %s215 = scalar_select %p214, %s23, 0
        %s216 = sadd.s32 %s215, %s213
        %s217 = smul.addr %s216, 8
        %s218 = scalar_lea.vmem %s1, %s217
        %p219 = pneg %p81
        %p220 = pneg %p78
        %p221 = pneg %p102
        %p222 = pneg %p99
        %p223 = pneg %p123
        %p224 = pneg %p120
        %p225 = pneg %p151
        %p226 = pneg %p148
        %s227 = sand.u32 %s138, 1
        %s228 = scalar_lea.sflag [#allocation3], %s227
        %s229 = sand.u32 %s138, 1
        %s230 = smul.addr %s229, 8
        %s231 = scalar_lea.vmem [#allocation2], %s230
        %p232 = scmp.lt.s32.totalorder %s22, 1
        %s233 = scalar_select %p232, %s22, 1
        %p234 = scmp.lt.s32.totalorder %s23, 0
        %s235 = scalar_select %p234, %s23, 0
        %s236 = sadd.s32 %s235, %s233
        %s237 = smul.addr %s236, 8
        %s238 = scalar_lea.vmem %s0, %s237
        %p239 = scmp.lt.s32.totalorder %s22, 1
        %s240 = scalar_select %p239, %s22, 1
        %p241 = scmp.lt.s32.totalorder %s23, 0
        %s242 = scalar_select %p241, %s23, 0
        %s243 = sadd.s32 %s242, %s240
        %s244 = smul.addr %s243, 8
        %s245 = scalar_lea.vmem %s1, %s244
        %v246 = vld [vmem:[%s238] sm:$0xff]
        %v247 = vld [vmem:[%s245] sm:$0xff]
        %v248 = vmul.f32 %v246, %v247
        %v249 = vld [vmem:[%s2] sm:$0xff]
        %251 = vset.pattern.permute.xlu0 0
        %252 = vperm.xlu0 %251, %v249
        %v253 = vpop.permute.xlu0 %252
        %v255 = vmul.f32 %v248, %v253
        %v256 = vld [vmem:[%s3] sm:$0xff]
        %258 = vset.pattern.permute.xlu0 0
        %259 = vperm.xlu0 %258, %v256
        %v260 = vpop.permute.xlu0 %259
        %v262 = vadd.f32 %v255, %v260
        %263 = vst [vmem:[%s231] sm:$0xff] %v262
        %s264 = sand.u32 %s138, 1
        %s265 = scalar_lea.sflag [#allocation3], %s264
        %s266 = sand.u32 %s138, 1
        %s267 = smul.addr %s266, 8
        %s268 = scalar_lea.vmem [#allocation2], %s267
        // Predicated region
        $region37: #{gated_deconv1d_forward.3} parent=35 // pred_check
          %p269 = pneg %p148
        $region38: #{gated_deconv1d_forward.3} parent=35 // pred_check_branch
          %271 = sbr.rel (%p269) target = $region40
        $region39: #{gated_deconv1d_forward.3} parent=35 // pred_region
          %s273 = ssub.s32 128, 128
          %274 = vsyncadd %s265, %s273
          %s275 = sadd.s32 %s23, %s22
          %s276 = smul.addr %s275, 128
          %s277 = scalar_lea.hbm %s4, %s276
          %s279 = sshll.u32 %s268, 4
          %s280 = int_to_ptr.vmem [resolvable:$true] %s279
          %282 = dma.vmem_to_hbm [thread:$0]  %s280, 128, %s277, %s265
        $region40: #{gated_deconv1d_forward.3} parent=35 // pred_fallthru
          _
      $region36: #{gated_deconv1d_forward.3} parent=5 // pred_fallthru
        _
      %p283 = scmp.le.s32.totalorder 2, %s13
      // Predicated region
      $region41: #{gated_deconv1d_forward.3} parent=5 // pred_check
        %p284 = pneg %p283
      $region42: #{gated_deconv1d_forward.3} parent=5 // pred_check_branch
        %286 = sbr.rel (%p284) target = $region44
      $region43: #{gated_deconv1d_forward.3} parent=5 // pred_region
        %s287 = ssub.s32 %s13, 2
        // Predicated region
        $region45: #{gated_deconv1d_forward.3} parent=43 // pred_check
          %p288 = pneg %p154
        $region46: #{gated_deconv1d_forward.3} parent=43 // pred_check_branch
          %290 = sbr.rel (%p288) target = $region48
        $region47: #{gated_deconv1d_forward.3} parent=43 // pred_region
          %s291 = sand.u32 %s139, 1
          %s292 = scalar_lea.sflag [#allocation3], %s291
          %s293 = sand.u32 %s139, 1
          %s294 = smul.addr %s293, 8
          %s295 = scalar_lea.vmem [#allocation2], %s294
          %296 = dma.done %s292, 128
        $region48: #{gated_deconv1d_forward.3} parent=43 // pred_fallthru
          _
      $region44: #{gated_deconv1d_forward.3} parent=5 // pred_fallthru
        _
    $region6: #{gated_deconv1d_forward.3} parent=1 // loop_footer
      %s17 = sadd.s32 1, %s13
    $region7: #{gated_deconv1d_forward.3} parent=1 // loop_footer_branch
      %12 = sbr.rel target = $region3
    $region8: #{gated_deconv1d_forward.3} parent=1 // loop_exit
      _
    %297 = vsyncpa [#allocation3], 1
    %s298 = scalar_lea.sflag [#allocation3], 1
    %299 = vsyncpa %s298, 1

// kernel: gated_deconv1d_forward.2
$region0: #{gated_deconv1d_forward.2}
  #allocation0 [shape = 'u32[]', space=smem, size = 0x4, offset = 0x4, fixed_abs, tag = 'smem constant byte address 0x4 - core index']
  #allocation1 [shape = 'u32[144,128]{1,0:T(1,128)}', space=vmem, size = 0x12000, scoped, tag = 'internal scratch']
  %s0 = inlined_call_operand.vmem [shape: f32[2,130,4], index: 0, kind: input, shape index: {}]
  %s1 = inlined_call_operand.vmem [shape: f32[3,16,4], index: 1, kind: input, shape index: {}]
  %s2 = inlined_call_operand.vmem [shape: f32[16,1], index: 2, kind: input, shape index: {}]
  %s3 = inlined_call_operand.vmem [shape: f32[2,8,128], index: 3, kind: output, shape index: {0}]
  %s4 = inlined_call_operand.vmem [shape: f32[2,8,128], index: 4, kind: output, shape index: {1}]
  %s5 = inlined_call_operand.vmem [shape: f32[2,1,8,1], index: 5, kind: output, shape index: {2}]
  %s6 = inlined_call_operand.vmem [shape: f32[2,1,8,1], index: 6, kind: output, shape index: {3}]
  %7 = xla_tuple %s3, %s4, %s5, %s6
  %s8 = sld [smem:[#allocation0]]
  $region69: #{gated_deconv1d_forward.2} parent=0
    _
  %s10 = ssub.s32 1, %s8
  %s11 = scalar_select 0, %s10, %s8
  loop: start=0, step=1, limit=4
  $region2: #{gated_deconv1d_forward.2} parent=0 // loop_pre_header
    _
  $region3: #{gated_deconv1d_forward.2} parent=0 // loop_header
    %s13 = sphi 0, %s17
    %p14 = scmp.ge.s32.totalorder %s13, 4
    %s20 = sphi 0, %s32
    %s21 = sphi 0, %s28
    %s22 = sphi 0, %s20
    %s23 = sphi 0, %s21
    %s24 = sphi 0, %s22
    %s25 = sphi 0, %s23
    %s35 = sphi 0, %s37
    %s38 = sphi 0, %s35
    %s39 = sphi 0, %s38
    %s55 = sphi 0, %s39
    %s59 = sphi 0, %s59
    %s61 = sphi 0, %s59
    %s62 = sphi 0, %s61
    %s76 = sphi 0, %s62
    %s80 = sphi 0, %s80
    %s82 = sphi 0, %s80
    %s83 = sphi 0, %s82
    %s97 = sphi 0, %s83
    %s105 = sphi 0, %s107
    %s108 = sphi 0, %s105
    %s109 = sphi 0, %s108
    %s125 = sphi 0, %s109
    %s133 = sphi 0, %s135
    %s136 = sphi 0, %s133
    %s137 = sphi 0, %s136
    %s153 = sphi 0, %s137
    %s161 = sphi 0, %s163
    %s164 = sphi 0, %s161
    %s165 = sphi 0, %s164
    %s181 = sphi 0, %s165
    %s189 = sphi 0, %s191
    %s192 = sphi 0, %s189
    %s193 = sphi 0, %s192
    %s209 = sphi 0, %s193
  $region4: #{gated_deconv1d_forward.2} parent=0 // loop_header_branch
    %16 = sbr.rel (%p14) target = $region8
  $region5: #{gated_deconv1d_forward.2} parent=0 // loop_body
    %s18 = ssub.s32 %s13, 1
    %s19 = ssub.s32 %s13, 2
    %s26 = sadd.s32 1, %s21
    %p27 = scmp.ge.s32.totalorder %s26, 1
    %s28 = scalar_select %p27, 0, %s26
    %s29 = sadd.s32 1, %s20
    %s30 = scalar_select %p27, %s29, %s20
    %p31 = scmp.ge.s32.totalorder %s30, 2
    %s32 = scalar_select %p31, 0, %s30
    %s33 = ssub.s32 %s20, %s32
    %p34 = scmp.eq.s32.totalorder %s33, 0
    %s36 = sadd.s32 %s35, 1
    %s37 = scalar_select %p34, %s35, %s36
    %p40 = pneg %p34
    %p41 = scmp.eq.s32.totalorder %s13, 1
    %p42 = por %p40, %p41
    %p43 = scmp.ne.s32.totalorder %s35, %s38
    %p44 = scmp.eq.s32.totalorder %s13, 0
    %p45 = por %p43, %p44
    %p46 = scmp.ne.s32.totalorder %s35, %s38
    %p47 = scmp.eq.s32.totalorder %s18, 1
    %p48 = por %p46, %p47
    %p49 = scmp.ne.s32.totalorder %s38, %s39
    %p50 = scmp.eq.s32.totalorder %s18, 0
    %p51 = por %p49, %p50
    %p52 = scmp.ne.s32.totalorder %s38, %s39
    %p53 = scmp.eq.s32.totalorder %s19, 1
    %p54 = por %p52, %p53
    %p56 = scmp.ne.s32.totalorder %s39, %s55
    %p57 = scmp.eq.s32.totalorder %s19, 0
    %p58 = por %p56, %p57
    %s60 = sadd.s32 %s59, 1
    %p63 = scmp.eq.s32.totalorder %s13, 1
    %p64 = scmp.ne.s32.totalorder %s59, %s61
    %p65 = scmp.eq.s32.totalorder %s13, 0
    %p66 = por %p64, %p65
    %p67 = scmp.ne.s32.totalorder %s59, %s61
    %p68 = scmp.eq.s32.totalorder %s18, 1
    %p69 = por %p67, %p68
    %p70 = scmp.ne.s32.totalorder %s61, %s62
    %p71 = scmp.eq.s32.totalorder %s18, 0
    %p72 = por %p70, %p71
    %p73 = scmp.ne.s32.totalorder %s61, %s62
    %p74 = scmp.eq.s32.totalorder %s19, 1
    %p75 = por %p73, %p74
    %p77 = scmp.ne.s32.totalorder %s62, %s76
    %p78 = scmp.eq.s32.totalorder %s19, 0
    %p79 = por %p77, %p78
    %s81 = sadd.s32 %s80, 1
    %p84 = scmp.eq.s32.totalorder %s13, 1
    %p85 = scmp.ne.s32.totalorder %s80, %s82
    %p86 = scmp.eq.s32.totalorder %s13, 0
    %p87 = por %p85, %p86
    %p88 = scmp.ne.s32.totalorder %s80, %s82
    %p89 = scmp.eq.s32.totalorder %s18, 1
    %p90 = por %p88, %p89
    %p91 = scmp.ne.s32.totalorder %s82, %s83
    %p92 = scmp.eq.s32.totalorder %s18, 0
    %p93 = por %p91, %p92
    %p94 = scmp.ne.s32.totalorder %s82, %s83
    %p95 = scmp.eq.s32.totalorder %s19, 1
    %p96 = por %p94, %p95
    %p98 = scmp.ne.s32.totalorder %s83, %s97
    %p99 = scmp.eq.s32.totalorder %s19, 0
    %p100 = por %p98, %p99
    %s101 = ssub.s32 %s20, %s32
    %s102 = ssub.s32 %s21, %s28
    %s103 = sor.u32 %s101, %s102
    %p104 = scmp.eq.s32.totalorder %s103, 0
    %s106 = sadd.s32 %s105, 1
    %s107 = scalar_select %p104, %s105, %s106
    %p110 = pneg %p104
    %p111 = scmp.eq.s32.totalorder %s13, 1
    %p112 = por %p110, %p111
    %p113 = scmp.ne.s32.totalorder %s105, %s108
    %p114 = scmp.eq.s32.totalorder %s13, 0
    %p115 = por %p113, %p114
    %p116 = scmp.ne.s32.totalorder %s105, %s108
    %p117 = scmp.eq.s32.totalorder %s18, 1
    %p118 = por %p116, %p117
    %p119 = scmp.ne.s32.totalorder %s108, %s109
    %p120 = scmp.eq.s32.totalorder %s18, 0
    %p121 = por %p119, %p120
    %p122 = scmp.ne.s32.totalorder %s108, %s109
    %p123 = scmp.eq.s32.totalorder %s19, 1
    %p124 = por %p122, %p123
    %p126 = scmp.ne.s32.totalorder %s109, %s125
    %p127 = scmp.eq.s32.totalorder %s19, 0
    %p128 = por %p126, %p127
    %s129 = ssub.s32 %s20, %s32
    %s130 = ssub.s32 %s21, %s28
    %s131 = sor.u32 %s129, %s130
    %p132 = scmp.eq.s32.totalorder %s131, 0
    %s134 = sadd.s32 %s133, 1
    %s135 = scalar_select %p132, %s133, %s134
    %p138 = pneg %p132
    %p139 = scmp.eq.s32.totalorder %s13, 1
    %p140 = por %p138, %p139
    %p141 = scmp.ne.s32.totalorder %s133, %s136
    %p142 = scmp.eq.s32.totalorder %s13, 0
    %p143 = por %p141, %p142
    %p144 = scmp.ne.s32.totalorder %s133, %s136
    %p145 = scmp.eq.s32.totalorder %s18, 1
    %p146 = por %p144, %p145
    %p147 = scmp.ne.s32.totalorder %s136, %s137
    %p148 = scmp.eq.s32.totalorder %s18, 0
    %p149 = por %p147, %p148
    %p150 = scmp.ne.s32.totalorder %s136, %s137
    %p151 = scmp.eq.s32.totalorder %s19, 1
    %p152 = por %p150, %p151
    %p154 = scmp.ne.s32.totalorder %s137, %s153
    %p155 = scmp.eq.s32.totalorder %s19, 0
    %p156 = por %p154, %p155
    %s157 = ssub.s32 %s20, %s32
    %s158 = ssub.s32 %s21, %s28
    %s159 = sor.u32 %s157, %s158
    %p160 = scmp.eq.s32.totalorder %s159, 0
    %s162 = sadd.s32 %s161, 1
    %s163 = scalar_select %p160, %s161, %s162
    %p166 = pneg %p160
    %p167 = scmp.eq.s32.totalorder %s13, 1
    %p168 = por %p166, %p167
    %p169 = scmp.ne.s32.totalorder %s161, %s164
    %p170 = scmp.eq.s32.totalorder %s13, 0
    %p171 = por %p169, %p170
    %p172 = scmp.ne.s32.totalorder %s161, %s164
    %p173 = scmp.eq.s32.totalorder %s18, 1
    %p174 = por %p172, %p173
    %p175 = scmp.ne.s32.totalorder %s164, %s165
    %p176 = scmp.eq.s32.totalorder %s18, 0
    %p177 = por %p175, %p176
    %p178 = scmp.ne.s32.totalorder %s164, %s165
    %p179 = scmp.eq.s32.totalorder %s19, 1
    %p180 = por %p178, %p179
    %p182 = scmp.ne.s32.totalorder %s165, %s181
    %p183 = scmp.eq.s32.totalorder %s19, 0
    %p184 = por %p182, %p183
    %s185 = ssub.s32 %s20, %s32
    %s186 = ssub.s32 %s21, %s28
    %s187 = sor.u32 %s185, %s186
    %p188 = scmp.eq.s32.totalorder %s187, 0
    %s190 = sadd.s32 %s189, 1
    %s191 = scalar_select %p188, %s189, %s190
    %p194 = pneg %p188
    %p195 = scmp.eq.s32.totalorder %s13, 1
    %p196 = por %p194, %p195
    %p197 = scmp.ne.s32.totalorder %s189, %s192
    %p198 = scmp.eq.s32.totalorder %s13, 0
    %p199 = por %p197, %p198
    %p200 = scmp.ne.s32.totalorder %s189, %s192
    %p201 = scmp.eq.s32.totalorder %s18, 1
    %p202 = por %p200, %p201
    %p203 = scmp.ne.s32.totalorder %s192, %s193
    %p204 = scmp.eq.s32.totalorder %s18, 0
    %p205 = por %p203, %p204
    %p206 = scmp.ne.s32.totalorder %s192, %s193
    %p207 = scmp.eq.s32.totalorder %s19, 1
    %p208 = por %p206, %p207
    %p210 = scmp.ne.s32.totalorder %s193, %s209
    %p211 = scmp.eq.s32.totalorder %s19, 0
    %p212 = por %p210, %p211
    %p213 = scmp.le.s32.totalorder 1, %s13
    %p214 = scmp.lt.s32.totalorder %s13, 3
    %p215 = pnand %p213, %p214
    %p216 = pneg %p215
    // Predicated region
    $region9: #{gated_deconv1d_forward.2} parent=5 // pred_check
      _
    $region10: #{gated_deconv1d_forward.2} parent=5 // pred_check_branch
      %218 = sbr.rel (%p215) target = $region12
    $region11: #{gated_deconv1d_forward.2} parent=5 // pred_region
      %s219 = ssub.s32 %s13, 1
      // Predicated region
      $region13: #{gated_deconv1d_forward.2} parent=11 // pred_check
        %p220 = pneg %p72
      $region14: #{gated_deconv1d_forward.2} parent=11 // pred_check_branch
        %222 = sbr.rel (%p220) target = $region16
      $region15: #{gated_deconv1d_forward.2} parent=11 // pred_region
        _
      $region16: #{gated_deconv1d_forward.2} parent=11 // pred_fallthru
        _
      // Predicated region
      $region17: #{gated_deconv1d_forward.2} parent=11 // pred_check
        %p223 = pneg %p93
      $region18: #{gated_deconv1d_forward.2} parent=11 // pred_check_branch
        %225 = sbr.rel (%p223) target = $region20
      $region19: #{gated_deconv1d_forward.2} parent=11 // pred_region
        _
      $region20: #{gated_deconv1d_forward.2} parent=11 // pred_fallthru
        _
    $region12: #{gated_deconv1d_forward.2} parent=5 // pred_fallthru
      _
    %p226 = scmp.lt.s32.totalorder %s13, 2
    // Predicated region
    $region21: #{gated_deconv1d_forward.2} parent=5 // pred_check
      %p227 = pneg %p226
    $region22: #{gated_deconv1d_forward.2} parent=5 // pred_check_branch
      %229 = sbr.rel (%p227) target = $region24
    $region23: #{gated_deconv1d_forward.2} parent=5 // pred_region
      // Predicated region
      $region25: #{gated_deconv1d_forward.2} parent=23 // pred_check
        %p230 = pneg %p45
      $region26: #{gated_deconv1d_forward.2} parent=23 // pred_check_branch
        %232 = sbr.rel (%p230) target = $region28
      $region27: #{gated_deconv1d_forward.2} parent=23 // pred_region
        %p233 = scmp.lt.s32.totalorder %s20, 1
        %s234 = scalar_select %p233, %s20, 1
        %s235 = smul.addr %s234, 17
        %s236 = smul.addr %s235, 8
        %s237 = scalar_lea.vmem %s0, %s236
      $region28: #{gated_deconv1d_forward.2} parent=23 // pred_fallthru
        _
    $region24: #{gated_deconv1d_forward.2} parent=5 // pred_fallthru
      _
    %p238 = scmp.le.s32.totalorder 1, %s13
    %p239 = scmp.lt.s32.totalorder %s13, 3
    %p240 = pnand %p238, %p239
    %p241 = pneg %p240
    // Predicated region
    $region29: #{gated_deconv1d_forward.2} parent=5 // pred_check
      _
    $region30: #{gated_deconv1d_forward.2} parent=5 // pred_check_branch
      %243 = sbr.rel (%p240) target = $region32
    $region31: #{gated_deconv1d_forward.2} parent=5 // pred_region
      %s244 = ssub.s32 %s13, 1
      %p245 = scmp.lt.s32.totalorder %s22, 1
      %s246 = scalar_select %p245, %s22, 1
      %s247 = smul.addr %s246, 17
      %s248 = smul.addr %s247, 8
      %s249 = scalar_lea.vmem %s0, %s248
      %p250 = pneg %p51
      %p251 = pneg %p48
      %p252 = pneg %p72
      %p253 = pneg %p69
      %p254 = pneg %p93
      %p255 = pneg %p90
      %p256 = pneg %p121
      %p257 = pneg %p118
      %p258 = scmp.lt.s32.totalorder %s22, 1
      %s259 = scalar_select %p258, %s22, 1
      %p260 = scmp.lt.s32.totalorder %s23, 0
      %s261 = scalar_select %p260, %s23, 0
      %s262 = sadd.s32 %s261, %s259
      %s263 = smul.addr %s262, 8
      %s264 = scalar_lea.vmem %s3, %s263
      %p265 = pneg %p149
      %p266 = pneg %p146
      %p267 = scmp.lt.s32.totalorder %s22, 1
      %s268 = scalar_select %p267, %s22, 1
      %p269 = scmp.lt.s32.totalorder %s23, 0
      %s270 = scalar_select %p269, %s23, 0
      %s271 = sadd.s32 %s270, %s268
      %s272 = smul.addr %s271, 8
      %s273 = scalar_lea.vmem %s4, %s272
      %p274 = pneg %p177
      %p275 = pneg %p174
      %p276 = scmp.lt.s32.totalorder %s22, 1
      %s277 = scalar_select %p276, %s22, 1
      %p278 = scmp.lt.s32.totalorder %s23, 0
      %s279 = scalar_select %p278, %s23, 0
      %s280 = sadd.s32 %s279, %s277
      %s281 = smul.addr %s280, 8
      %s282 = scalar_lea.vmem %s5, %s281
      %p283 = pneg %p205
      %p284 = pneg %p202
      %p285 = scmp.lt.s32.totalorder %s22, 1
      %s286 = scalar_select %p285, %s22, 1
      %p287 = scmp.lt.s32.totalorder %s23, 0
      %s288 = scalar_select %p287, %s23, 0
      %s289 = sadd.s32 %s288, %s286
      %s290 = smul.addr %s289, 8
      %s291 = scalar_lea.vmem %s6, %s290
      %p292 = scmp.lt.s32.totalorder %s22, 1
      %s293 = scalar_select %p292, %s22, 1
      %s294 = smul.addr %s293, 17
      %s295 = smul.addr %s294, 8
      %s296 = scalar_lea.vmem %s0, %s295
      %p297 = scmp.lt.s32.totalorder %s22, 1
      %s298 = scalar_select %p297, %s22, 1
      %p299 = scmp.lt.s32.totalorder %s23, 0
      %s300 = scalar_select %p299, %s23, 0
      %s301 = sadd.s32 %s300, %s298
      %s302 = smul.addr %s301, 8
      %s303 = scalar_lea.vmem %s3, %s302
      %p304 = scmp.lt.s32.totalorder %s22, 1
      %s305 = scalar_select %p304, %s22, 1
      %p306 = scmp.lt.s32.totalorder %s23, 0
      %s307 = scalar_select %p306, %s23, 0
      %s308 = sadd.s32 %s307, %s305
      %s309 = smul.addr %s308, 8
      %s310 = scalar_lea.vmem %s4, %s309
      %p311 = scmp.lt.s32.totalorder %s22, 1
      %s312 = scalar_select %p311, %s22, 1
      %p313 = scmp.lt.s32.totalorder %s23, 0
      %s314 = scalar_select %p313, %s23, 0
      %s315 = sadd.s32 %s314, %s312
      %s316 = smul.addr %s315, 8
      %s317 = scalar_lea.vmem %s5, %s316
      %p318 = scmp.lt.s32.totalorder %s22, 1
      %s319 = scalar_select %p318, %s22, 1
      %p320 = scmp.lt.s32.totalorder %s23, 0
      %s321 = scalar_select %p320, %s23, 0
      %s322 = sadd.s32 %s321, %s319
      %s323 = smul.addr %s322, 8
      %s324 = scalar_lea.vmem %s6, %s323
      %s325 = smul.u32 %s23, 128
      %s326 = scalar_lea.vmem %s296, %s325
      %v327 = vld [vmem:[%s326] sm:$0xff]
      %v328 = vld [vmem:[%s326 + $0x8] sm:$0xff]
      %v329 = vld [vmem:[%s326 + $0x10] sm:$0xff]
      %v330 = vld [vmem:[%s326 + $0x18] sm:$0xff]
      %v331 = vld [vmem:[%s326 + $0x20] sm:$0xff]
      %v332 = vld [vmem:[%s326 + $0x28] sm:$0xff]
      %v333 = vld [vmem:[%s326 + $0x30] sm:$0xff]
      %v334 = vld [vmem:[%s326 + $0x38] sm:$0xff]
      %v335 = vld [vmem:[%s326 + $0x40] sm:$0xff]
      %v336 = vld [vmem:[%s326 + $0x48] sm:$0xff]
      %v337 = vld [vmem:[%s326 + $0x50] sm:$0xff]
      %v338 = vld [vmem:[%s326 + $0x58] sm:$0xff]
      %v339 = vld [vmem:[%s326 + $0x60] sm:$0xff]
      %v340 = vld [vmem:[%s326 + $0x68] sm:$0xff]
      %v341 = vld [vmem:[%s326 + $0x70] sm:$0xff]
      %v342 = vld [vmem:[%s326 + $0x78] sm:$0xff]
      %v343 = vld [vmem:[%s326 + $0x80] sm:$0x3]
      %v344 = vld [vmem:[%s1] sm:$0xff]
      %v345 = vld [vmem:[%s1 + $0x8] sm:$0xff]
      %v346 = vld [vmem:[%s1 + $0x10] sm:$0xff]
      %v347 = vld [vmem:[%s1 + $0x18] sm:$0xff]
      %v348 = vld [vmem:[%s1 + $0x20] sm:$0xff]
      %v349 = vld [vmem:[%s1 + $0x28] sm:$0xff]
      %vm367 = vcmask 1046528
      %v368 = vrot.slane %v327, 1
      %v369 = vrot.slane %v328, 1
      %v370 = vsel %vm367, %v368, %v369
      %v371 = vrot.slane %v329, 1
      %v372 = vsel %vm367, %v369, %v371
      %v373 = vrot.slane %v330, 1
      %v374 = vsel %vm367, %v371, %v373
      %v375 = vrot.slane %v331, 1
      %v376 = vsel %vm367, %v373, %v375
      %v377 = vrot.slane %v332, 1
      %v378 = vsel %vm367, %v375, %v377
      %v379 = vrot.slane %v333, 1
      %v380 = vsel %vm367, %v377, %v379
      %v381 = vrot.slane %v334, 1
      %v382 = vsel %vm367, %v379, %v381
      %v383 = vrot.slane %v335, 1
      %v384 = vsel %vm367, %v381, %v383
      %v385 = vrot.slane %v336, 1
      %v386 = vsel %vm367, %v383, %v385
      %v387 = vrot.slane %v337, 1
      %v388 = vsel %vm367, %v385, %v387
      %v389 = vrot.slane %v338, 1
      %v390 = vsel %vm367, %v387, %v389
      %v391 = vrot.slane %v339, 1
      %v392 = vsel %vm367, %v389, %v391
      %v393 = vrot.slane %v340, 1
      %v394 = vsel %vm367, %v391, %v393
      %v395 = vrot.slane %v341, 1
      %v396 = vsel %vm367, %v393, %v395
      %v397 = vrot.slane %v342, 1
      %v398 = vsel %vm367, %v395, %v397
      %v399 = vrot.slane %v343, 1
      %v400 = vsel %vm367, %v397, %v399
      %vm401 = vcmask 31744
      %v403 = vsel %vm401, %v346, 0
      %v406 = vsel %vm401, %v347, 0
      %v408 = vsel %vm401, %v370, 0
      %v410 = vsel %vm401, %v372, 0
      %v412 = vsel %vm401, %v374, 0
      %v414 = vsel %vm401, %v376, 0
      %v416 = vsel %vm401, %v378, 0
      %v418 = vsel %vm401, %v380, 0
      %v420 = vsel %vm401, %v382, 0
      %v422 = vsel %vm401, %v384, 0
      %v424 = vsel %vm401, %v386, 0
      %v426 = vsel %vm401, %v388, 0
      %v428 = vsel %vm401, %v390, 0
      %v430 = vsel %vm401, %v392, 0
      %v432 = vsel %vm401, %v394, 0
      %v434 = vsel %vm401, %v396, 0
      %v436 = vsel %vm401, %v398, 0
      %v438 = vsel %vm401, %v400, 0
      %440 = vmatprep.subr.mxu0 0.0
      %441 = vmatpush1.xpose.msra.mxu0 %v408
      %442 = vmatprep.subr.mxu0 0.0
      %443 = vmatpush1.xpose.msra.mxu0 %v410
      %444 = vmatprep.subr.mxu0 0.0
      %445 = vmatpush1.xpose.msra.mxu0 %v412
      %446 = vmatprep.subr.mxu0 0.0
      %447 = vmatpush1.xpose.msra.mxu0 %v414
      %448 = vmatprep.subr.mxu0 0.0
      %449 = vmatpush1.xpose.msra.mxu0 %v416
      %450 = vmatprep.subr.mxu0 0.0
      %451 = vmatpush1.xpose.msra.mxu0 %v418
      %452 = vmatprep.subr.mxu0 0.0
      %453 = vmatpush1.xpose.msra.mxu0 %v420
      %454 = vmatprep.subr.mxu0 0.0
      %455 = vmatpush1.xpose.msra.mxu0 %v422
      %456 = vmatprep.subr.mxu0 0.0
      %457 = vmatpush1.xpose.msra.mxu0 %v424
      %458 = vmatprep.subr.mxu0 0.0
      %459 = vmatpush1.xpose.msra.mxu0 %v426
      %460 = vmatprep.subr.mxu0 0.0
      %461 = vmatpush1.xpose.msra.mxu0 %v428
      %462 = vmatprep.subr.mxu0 0.0
      %463 = vmatpush1.xpose.msra.mxu0 %v430
      %464 = vmatprep.subr.mxu0 0.0
      %465 = vmatpush1.xpose.msra.mxu0 %v432
      %466 = vmatprep.subr.mxu0 0.0
      %467 = vmatpush1.xpose.msra.mxu0 %v434
      %468 = vmatprep.subr.mxu0 0.0
      %469 = vmatpush1.xpose.msra.mxu0 %v436
      %470 = vmatprep.subr.mxu0 0.0
      %471 = vmatpush1.xpose.msra.mxu0 %v438
      %472 = vmatprep.subr.mxu0 0.0
      %473 = vmatpush1.xpose.msra.mxu0 0.0
      %474 = vmatprep.subr.mxu0 0.0
      %475 = vmatpush1.xpose.msra.mxu0 0.0
      %476 = vmatprep.subr.mxu0 0.0
      %477 = vmatpush1.xpose.msra.mxu0 0.0
      %478 = vmatprep.subr.mxu0 0.0
      %479 = vmatpush1.xpose.msra.mxu0 0.0
      %480 = vmatprep.subr.mxu0 0.0
      %481 = vmatpush1.xpose.msra.mxu0 0.0
      %482 = vmatprep.subr.mxu0 0.0
      %483 = vmatpush1.xpose.msra.mxu0 0.0
      %484 = vmatprep.subr.mxu0 0.0
      %485 = vmatpush1.xpose.msra.mxu0 0.0
      %486 = vmatprep.subr.mxu0 0.0
      %487 = vmatpush1.xpose.msra.mxu0 0.0
      %488 = vmatprep.subr.mxu0 0.0
      %489 = vmatpush1.xpose.msra.mxu0 0.0
      %490 = vmatprep.subr.mxu0 0.0
      %491 = vmatpush1.xpose.msra.mxu0 0.0
      %492 = vmatprep.subr.mxu0 0.0
      %493 = vmatpush1.xpose.msra.mxu0 0.0
      %494 = vmatprep.subr.mxu0 0.0
      %495 = vmatpush1.xpose.msra.mxu0 0.0
      %496 = vmatprep.subr.mxu0 0.0
      %497 = vmatpush1.xpose.msra.mxu0 0.0
      %498 = vmatprep.subr.mxu0 0.0
      %499 = vmatpush1.xpose.msra.mxu0 0.0
      %500 = vmatprep.subr.mxu0 0.0
      %501 = vmatpush1.xpose.msra.mxu0 0.0
      %502 = vmatprep.subr.mxu0 0.0
      %503 = vmatpush1.xpose.msra.mxu0 0.0
      %504 = vmatprep.mubr.f32.mxu0 0.0
      %505 = vmatmul.mubr.f32.gmra.mrb[0].mxu0 %v403
      %v506 = vpop.f32.mrb[0].mxu0
      %v507 = vadd.f32 0.0, %v506
      %v508 = vpop.f32.mrb[0].mxu0
      %509 = vmatprep.mubr.f32.mxu0 0.0
      %510 = vmatmul.mubr.f32.gmra.mrb[0].mxu0 %v406
      %v511 = vpop.f32.mrb[0].mxu0
      %v512 = vadd.f32 0.0, %v511
      %v513 = vpop.f32.mrb[0].mxu0
      %514 = vdwg.mxu0
      %v516 = vsel %vm401, %v344, 0
      %v519 = vsel %vm401, %v345, 0
      %v521 = vsel %vm401, %v327, 0
      %v523 = vsel %vm401, %v328, 0
      %v525 = vsel %vm401, %v329, 0
      %v527 = vsel %vm401, %v330, 0
      %v529 = vsel %vm401, %v331, 0
      %v531 = vsel %vm401, %v332, 0
      %v533 = vsel %vm401, %v333, 0
      %v535 = vsel %vm401, %v334, 0
      %v537 = vsel %vm401, %v335, 0
      %v539 = vsel %vm401, %v336, 0
      %v541 = vsel %vm401, %v337, 0
      %v543 = vsel %vm401, %v338, 0
      %v545 = vsel %vm401, %v339, 0
      %v547 = vsel %vm401, %v340, 0
      %v549 = vsel %vm401, %v341, 0
      %v551 = vsel %vm401, %v342, 0
      %553 = vmatprep.subr.mxu0 0.0
      %554 = vmatpush1.xpose.msra.mxu0 %v521
      %555 = vmatprep.subr.mxu0 0.0
      %556 = vmatpush1.xpose.msra.mxu0 %v523
      %557 = vmatprep.subr.mxu0 0.0
      %558 = vmatpush1.xpose.msra.mxu0 %v525
      %559 = vmatprep.subr.mxu0 0.0
      %560 = vmatpush1.xpose.msra.mxu0 %v527
      %561 = vmatprep.subr.mxu0 0.0
      %562 = vmatpush1.xpose.msra.mxu0 %v529
      %563 = vmatprep.subr.mxu0 0.0
      %564 = vmatpush1.xpose.msra.mxu0 %v531
      %565 = vmatprep.subr.mxu0 0.0
      %566 = vmatpush1.xpose.msra.mxu0 %v533
      %567 = vmatprep.subr.mxu0 0.0
      %568 = vmatpush1.xpose.msra.mxu0 %v535
      %569 = vmatprep.subr.mxu0 0.0
      %570 = vmatpush1.xpose.msra.mxu0 %v537
      %571 = vmatprep.subr.mxu0 0.0
      %572 = vmatpush1.xpose.msra.mxu0 %v539
      %573 = vmatprep.subr.mxu0 0.0
      %574 = vmatpush1.xpose.msra.mxu0 %v541
      %575 = vmatprep.subr.mxu0 0.0
      %576 = vmatpush1.xpose.msra.mxu0 %v543
      %577 = vmatprep.subr.mxu0 0.0
      %578 = vmatpush1.xpose.msra.mxu0 %v545
      %579 = vmatprep.subr.mxu0 0.0
      %580 = vmatpush1.xpose.msra.mxu0 %v547
      %581 = vmatprep.subr.mxu0 0.0
      %582 = vmatpush1.xpose.msra.mxu0 %v549
      %583 = vmatprep.subr.mxu0 0.0
      %584 = vmatpush1.xpose.msra.mxu0 %v551
      %585 = vmatprep.subr.mxu0 0.0
      %586 = vmatpush1.xpose.msra.mxu0 0.0
      %587 = vmatprep.subr.mxu0 0.0
      %588 = vmatpush1.xpose.msra.mxu0 0.0
      %589 = vmatprep.subr.mxu0 0.0
      %590 = vmatpush1.xpose.msra.mxu0 0.0
      %591 = vmatprep.subr.mxu0 0.0
      %592 = vmatpush1.xpose.msra.mxu0 0.0
      %593 = vmatprep.subr.mxu0 0.0
      %594 = vmatpush1.xpose.msra.mxu0 0.0
      %595 = vmatprep.subr.mxu0 0.0
      %596 = vmatpush1.xpose.msra.mxu0 0.0
      %597 = vmatprep.subr.mxu0 0.0
      %598 = vmatpush1.xpose.msra.mxu0 0.0
      %599 = vmatprep.subr.mxu0 0.0
      %600 = vmatpush1.xpose.msra.mxu0 0.0
      %601 = vmatprep.subr.mxu0 0.0
      %602 = vmatpush1.xpose.msra.mxu0 0.0
      %603 = vmatprep.subr.mxu0 0.0
      %604 = vmatpush1.xpose.msra.mxu0 0.0
      %605 = vmatprep.subr.mxu0 0.0
      %606 = vmatpush1.xpose.msra.mxu0 0.0
      %607 = vmatprep.subr.mxu0 0.0
      %608 = vmatpush1.xpose.msra.mxu0 0.0
      %609 = vmatprep.subr.mxu0 0.0
      %610 = vmatpush1.xpose.msra.mxu0 0.0
      %611 = vmatprep.subr.mxu0 0.0
      %612 = vmatpush1.xpose.msra.mxu0 0.0
      %613 = vmatprep.subr.mxu0 0.0
      %614 = vmatpush1.xpose.msra.mxu0 0.0
      %615 = vmatprep.subr.mxu0 0.0
      %616 = vmatpush1.xpose.msra.mxu0 0.0
      %617 = vmatprep.mubr.f32.mxu0 0.0
      %618 = vmatmul.mubr.f32.gmra.mrb[0].mxu0 %v516
      %v619 = vpop.f32.mrb[0].mxu0
      %v620 = vadd.f32 %v507, %v619
      %v621 = vpop.f32.mrb[0].mxu0
      %622 = vmatprep.mubr.f32.mxu0 0.0
      %623 = vmatmul.mubr.f32.gmra.mrb[0].mxu0 %v519
      %v624 = vpop.f32.mrb[0].mxu0
      %v625 = vadd.f32 %v512, %v624
      %v626 = vpop.f32.mrb[0].mxu0
      %627 = vdwg.mxu0
      %vm628 = vcmask 1045504
      %v629 = vrot.slane %v327, 2
      %v630 = vrot.slane %v328, 2
      %v631 = vsel %vm628, %v629, %v630
      %v632 = vrot.slane %v329, 2
      %v633 = vsel %vm628, %v630, %v632
      %v634 = vrot.slane %v330, 2
      %v635 = vsel %vm628, %v632, %v634
      %v636 = vrot.slane %v331, 2
      %v637 = vsel %vm628, %v634, %v636
      %v638 = vrot.slane %v332, 2
      %v639 = vsel %vm628, %v636, %v638
      %v640 = vrot.slane %v333, 2
      %v641 = vsel %vm628, %v638, %v640
      %v642 = vrot.slane %v334, 2
      %v643 = vsel %vm628, %v640, %v642
      %v644 = vrot.slane %v335, 2
      %v645 = vsel %vm628, %v642, %v644
      %v646 = vrot.slane %v336, 2
      %v647 = vsel %vm628, %v644, %v646
      %v648 = vrot.slane %v337, 2
      %v649 = vsel %vm628, %v646, %v648
      %v650 = vrot.slane %v338, 2
      %v651 = vsel %vm628, %v648, %v650
      %v652 = vrot.slane %v339, 2
      %v653 = vsel %vm628, %v650, %v652
      %v654 = vrot.slane %v340, 2
      %v655 = vsel %vm628, %v652, %v654
      %v656 = vrot.slane %v341, 2
      %v657 = vsel %vm628, %v654, %v656
      %v658 = vrot.slane %v342, 2
      %v659 = vsel %vm628, %v656, %v658
      %v660 = vrot.slane %v343, 2
      %v661 = vsel %vm628, %v658, %v660
      %v663 = vsel %vm401, %v348, 0
      %v666 = vsel %vm401, %v349, 0
      %v668 = vsel %vm401, %v631, 0
      %v670 = vsel %vm401, %v633, 0
      %v672 = vsel %vm401, %v635, 0
      %v674 = vsel %vm401, %v637, 0
      %v676 = vsel %vm401, %v639, 0
      %v678 = vsel %vm401, %v641, 0
      %v680 = vsel %vm401, %v643, 0
      %v682 = vsel %vm401, %v645, 0
      %v684 = vsel %vm401, %v647, 0
      %v686 = vsel %vm401, %v649, 0
      %v688 = vsel %vm401, %v651, 0
      %v690 = vsel %vm401, %v653, 0
      %v692 = vsel %vm401, %v655, 0
      %v694 = vsel %vm401, %v657, 0
      %v696 = vsel %vm401, %v659, 0
      %v698 = vsel %vm401, %v661, 0
      %700 = vmatprep.subr.mxu0 0.0
      %701 = vmatpush1.xpose.msra.mxu0 %v668
      %702 = vmatprep.subr.mxu0 0.0
      %703 = vmatpush1.xpose.msra.mxu0 %v670
      %704 = vmatprep.subr.mxu0 0.0
      %705 = vmatpush1.xpose.msra.mxu0 %v672
      %706 = vmatprep.subr.mxu0 0.0
      %707 = vmatpush1.xpose.msra.mxu0 %v674
      %708 = vmatprep.subr.mxu0 0.0
      %709 = vmatpush1.xpose.msra.mxu0 %v676
      %710 = vmatprep.subr.mxu0 0.0
      %711 = vmatpush1.xpose.msra.mxu0 %v678
      %712 = vmatprep.subr.mxu0 0.0
      %713 = vmatpush1.xpose.msra.mxu0 %v680
      %714 = vmatprep.subr.mxu0 0.0
      %715 = vmatpush1.xpose.msra.mxu0 %v682
      %716 = vmatprep.subr.mxu0 0.0
      %717 = vmatpush1.xpose.msra.mxu0 %v684
      %718 = vmatprep.subr.mxu0 0.0
      %719 = vmatpush1.xpose.msra.mxu0 %v686
      %720 = vmatprep.subr.mxu0 0.0
      %721 = vmatpush1.xpose.msra.mxu0 %v688
      %722 = vmatprep.subr.mxu0 0.0
      %723 = vmatpush1.xpose.msra.mxu0 %v690
      %724 = vmatprep.subr.mxu0 0.0
      %725 = vmatpush1.xpose.msra.mxu0 %v692
      %726 = vmatprep.subr.mxu0 0.0
      %727 = vmatpush1.xpose.msra.mxu0 %v694
      %728 = vmatprep.subr.mxu0 0.0
      %729 = vmatpush1.xpose.msra.mxu0 %v696
      %730 = vmatprep.subr.mxu0 0.0
      %731 = vmatpush1.xpose.msra.mxu0 %v698
      %732 = vmatprep.subr.mxu0 0.0
      %733 = vmatpush1.xpose.msra.mxu0 0.0
      %734 = vmatprep.subr.mxu0 0.0
      %735 = vmatpush1.xpose.msra.mxu0 0.0
      %736 = vmatprep.subr.mxu0 0.0
      %737 = vmatpush1.xpose.msra.mxu0 0.0
      %738 = vmatprep.subr.mxu0 0.0
      %739 = vmatpush1.xpose.msra.mxu0 0.0
      %740 = vmatprep.subr.mxu0 0.0
      %741 = vmatpush1.xpose.msra.mxu0 0.0
      %742 = vmatprep.subr.mxu0 0.0
      %743 = vmatpush1.xpose.msra.mxu0 0.0
      %744 = vmatprep.subr.mxu0 0.0
      %745 = vmatpush1.xpose.msra.mxu0 0.0
      %746 = vmatprep.subr.mxu0 0.0
      %747 = vmatpush1.xpose.msra.mxu0 0.0
      %748 = vmatprep.subr.mxu0 0.0
      %749 = vmatpush1.xpose.msra.mxu0 0.0
      %750 = vmatprep.subr.mxu0 0.0
      %751 = vmatpush1.xpose.msra.mxu0 0.0
      %752 = vmatprep.subr.mxu0 0.0
      %753 = vmatpush1.xpose.msra.mxu0 0.0
      %754 = vmatprep.subr.mxu0 0.0
      %755 = vmatpush1.xpose.msra.mxu0 0.0
      %756 = vmatprep.subr.mxu0 0.0
      %757 = vmatpush1.xpose.msra.mxu0 0.0
      %758 = vmatprep.subr.mxu0 0.0
      %759 = vmatpush1.xpose.msra.mxu0 0.0
      %760 = vmatprep.subr.mxu0 0.0
      %761 = vmatpush1.xpose.msra.mxu0 0.0
      %762 = vmatprep.subr.mxu0 0.0
      %763 = vmatpush1.xpose.msra.mxu0 0.0
      %764 = vmatprep.mubr.f32.mxu0 0.0
      %765 = vmatmul.mubr.f32.gmra.mrb[0].mxu0 %v663
      %v766 = vpop.f32.mrb[0].mxu0
      %v767 = vadd.f32 0.0, %v766
      %v768 = vpop.f32.mrb[0].mxu0
      %769 = vmatprep.mubr.f32.mxu0 0.0
      %770 = vmatmul.mubr.f32.gmra.mrb[0].mxu0 %v666
      %v771 = vpop.f32.mrb[0].mxu0
      %v772 = vadd.f32 0.0, %v771
      %v773 = vpop.f32.mrb[0].mxu0
      %774 = vdwg.mxu0
      %v775 = vadd.f32 %v620, %v767
      %v776 = vadd.f32 %v625, %v772
      %v777 = vld [vmem:[%s2] sm:$0xff]
      %v778 = vld [vmem:[%s2 + $0x8] sm:$0xff]
      %780 = vset.pattern.permute.xlu0 0
      %781 = vperm.xlu0 %780, %v777
      %v782 = vpop.permute.xlu0 %781
      %785 = vset.pattern.permute.xlu0 0
      %786 = vperm.xlu0 %785, %v778
      %v787 = vpop.permute.xlu0 %786
      %v789 = vadd.f32 %v775, %v782
      %v790 = vadd.f32 %v776, %v787
      %vm791 = vcmp.ge.f32.partialorder %v789, 0.0
      %v792 = vmul.f32 %v789, 0.2
      %v793 = vsel %vm791, %v789, %v792
      %v794 = vsub.f32 0.0, %v790
      %v795 = vmin.f32 %v794, 88.0
      %v796 = vmul.f32 %v795, 1.442695
      %v797 = vpow.pop %v796
      %v798 = vadd.f32 %v797, 1.0
      %v799 = vrcp.pop %v798
      %v800 = vmul.f32 %v793, %v799
      %v801 = vlaneseq
      %v802 = vand.u32 %v801, 127
      %v803 = vstv %s325
      %v804 = vadd.s32 %v802, %v803
      %vm805 = vcmp.lt.s32.totalorder %v804, 32
      %v806 = vsel %vm805, 1, 0
      %v807 = vcvt.s32.f32 %v806
      %v808 = vmul.f32 %v800, %v807
      %809 = vadd.xlane.f32.xlu0 %v808
      %v810 = vpop.xlane.xlu0 %809
      %vm811 = vcmask 7168
      %812 = vst.msk [vmem:[%s317] sm:$0xff] %vm811, %v810
      %v813 = vmul.f32 %v808, %v808
      %814 = vadd.xlane.f32.xlu0 %v813
      %v815 = vpop.xlane.xlu0 %814
      %816 = vst.msk [vmem:[%s324] sm:$0xff] %vm811, %v815
      %817 = vst [vmem:[%s303] sm:$0xff] %v793
      %818 = vst [vmem:[%s310] sm:$0xff] %v799
      %p819 = scmp.lt.s32.totalorder %s22, 1
      %s820 = scalar_select %p819, %s22, 1
      %p821 = scmp.lt.s32.totalorder %s23, 0
      %s822 = scalar_select %p821, %s23, 0
      %s823 = sadd.s32 %s822, %s820
      %s824 = smul.addr %s823, 8
      %s825 = scalar_lea.vmem %s3, %s824
      %p826 = scmp.lt.s32.totalorder %s22, 1
      %s827 = scalar_select %p826, %s22, 1
      %p828 = scmp.lt.s32.totalorder %s23, 0
      %s829 = scalar_select %p828, %s23, 0
      %s830 = sadd.s32 %s829, %s827
      %s831 = smul.addr %s830, 8
      %s832 = scalar_lea.vmem %s4, %s831
      %p833 = scmp.lt.s32.totalorder %s22, 1
      %s834 = scalar_select %p833, %s22, 1
      %p835 = scmp.lt.s32.totalorder %s23, 0
      %s836 = scalar_select %p835, %s23, 0
      %s837 = sadd.s32 %s836, %s834
      %s838 = smul.addr %s837, 8
      %s839 = scalar_lea.vmem %s5, %s838
      %p840 = scmp.lt.s32.totalorder %s22, 1
      %s841 = scalar_select %p840, %s22, 1
      %p842 = scmp.lt.s32.totalorder %s23, 0
      %s843 = scalar_select %p842, %s23, 0
      %s844 = sadd.s32 %s843, %s841
      %s845 = smul.addr %s844, 8
      %s846 = scalar_lea.vmem %s6, %s845
      // Predicated region
      $region33: #{gated_deconv1d_forward.2} parent=31 // pred_check
        %p847 = pneg %p118
      $region34: #{gated_deconv1d_forward.2} parent=31 // pred_check_branch
        %849 = sbr.rel (%p847) target = $region36
      $region35: #{gated_deconv1d_forward.2} parent=31 // pred_region
        _
      $region36: #{gated_deconv1d_forward.2} parent=31 // pred_fallthru
        _
      // Predicated region
      $region37: #{gated_deconv1d_forward.2} parent=31 // pred_check
        %p850 = pneg %p146
      $region38: #{gated_deconv1d_forward.2} parent=31 // pred_check_branch
        %852 = sbr.rel (%p850) target = $region40
      $region39: #{gated_deconv1d_forward.2} parent=31 // pred_region
        _
      $region40: #{gated_deconv1d_forward.2} parent=31 // pred_fallthru
        _
      // Predicated region
      $region41: #{gated_deconv1d_forward.2} parent=31 // pred_check
        %p853 = pneg %p174
      $region42: #{gated_deconv1d_forward.2} parent=31 // pred_check_branch
        %855 = sbr.rel (%p853) target = $region44
      $region43: #{gated_deconv1d_forward.2} parent=31 // pred_region
        _
      $region44: #{gated_deconv1d_forward.2} parent=31 // pred_fallthru
        _
      // Predicated region
      $region45: #{gated_deconv1d_forward.2} parent=31 // pred_check
        %p856 = pneg %p202
      $region46: #{gated_deconv1d_forward.2} parent=31 // pred_check_branch
        %858 = sbr.rel (%p856) target = $region48
      $region47: #{gated_deconv1d_forward.2} parent=31 // pred_region
        _
      $region48: #{gated_deconv1d_forward.2} parent=31 // pred_fallthru
        _
    $region32: #{gated_deconv1d_forward.2} parent=5 // pred_fallthru
      _
    %p859 = scmp.le.s32.totalorder 2, %s13
    // Predicated region
    $region49: #{gated_deconv1d_forward.2} parent=5 // pred_check
      %p860 = pneg %p859
    $region50: #{gated_deconv1d_forward.2} parent=5 // pred_check_branch
      %862 = sbr.rel (%p860) target = $region52
    $region51: #{gated_deconv1d_forward.2} parent=5 // pred_region
      %s863 = ssub.s32 %s13, 2
      // Predicated region
      $region53: #{gated_deconv1d_forward.2} parent=51 // pred_check
        %p864 = pneg %p124
      $region54: #{gated_deconv1d_forward.2} parent=51 // pred_check_branch
        %866 = sbr.rel (%p864) target = $region56
      $region55: #{gated_deconv1d_forward.2} parent=51 // pred_region
        %p867 = scmp.lt.s32.totalorder %s24, 1
        %s868 = scalar_select %p867, %s24, 1
        %p869 = scmp.lt.s32.totalorder %s25, 0
        %s870 = scalar_select %p869, %s25, 0
        %s871 = sadd.s32 %s870, %s868
        %s872 = smul.addr %s871, 8
        %s873 = scalar_lea.vmem %s3, %s872
      $region56: #{gated_deconv1d_forward.2} parent=51 // pred_fallthru
        _
      // Predicated region
      $region57: #{gated_deconv1d_forward.2} parent=51 // pred_check
        %p874 = pneg %p152
      $region58: #{gated_deconv1d_forward.2} parent=51 // pred_check_branch
        %876 = sbr.rel (%p874) target = $region60
      $region59: #{gated_deconv1d_forward.2} parent=51 // pred_region
        %p877 = scmp.lt.s32.totalorder %s24, 1
        %s878 = scalar_select %p877, %s24, 1
        %p879 = scmp.lt.s32.totalorder %s25, 0
        %s880 = scalar_select %p879, %s25, 0
        %s881 = sadd.s32 %s880, %s878
        %s882 = smul.addr %s881, 8
        %s883 = scalar_lea.vmem %s4, %s882
      $region60: #{gated_deconv1d_forward.2} parent=51 // pred_fallthru
        _
      // Predicated region
      $region61: #{gated_deconv1d_forward.2} parent=51 // pred_check
        %p884 = pneg %p180
      $region62: #{gated_deconv1d_forward.2} parent=51 // pred_check_branch
        %886 = sbr.rel (%p884) target = $region64
      $region63: #{gated_deconv1d_forward.2} parent=51 // pred_region
        %p887 = scmp.lt.s32.totalorder %s24, 1
        %s888 = scalar_select %p887, %s24, 1
        %p889 = scmp.lt.s32.totalorder %s25, 0
        %s890 = scalar_select %p889, %s25, 0
        %s891 = sadd.s32 %s890, %s888
        %s892 = smul.addr %s891, 8
        %s893 = scalar_lea.vmem %s5, %s892
      $region64: #{gated_deconv1d_forward.2} parent=51 // pred_fallthru
        _
      // Predicated region
      $region65: #{gated_deconv1d_forward.2} parent=51 // pred_check
        %p894 = pneg %p208
      $region66: #{gated_deconv1d_forward.2} parent=51 // pred_check_branch
        %896 = sbr.rel (%p894) target = $region68
      $region67: #{gated_deconv1d_forward.2} parent=51 // pred_region
        %p897 = scmp.lt.s32.totalorder %s24, 1
        %s898 = scalar_select %p897, %s24, 1
        %p899 = scmp.lt.s32.totalorder %s25, 0
        %s900 = scalar_select %p899, %s25, 0
        %s901 = sadd.s32 %s900, %s898
        %s902 = smul.addr %s901, 8
        %s903 = scalar_lea.vmem %s6, %s902
      $region68: #{gated_deconv1d_forward.2} parent=51 // pred_fallthru
        _
    $region52: #{gated_deconv1d_forward.2} parent=5 // pred_fallthru
      _
  $region6: #{gated_deconv1d_forward.2} parent=0 // loop_footer
    %s17 = sadd.s32 1, %s13
  $region7: #{gated_deconv1d_forward.2} parent=0 // loop_footer_branch
    %12 = sbr.rel target = $region3
  $region8: #{gated_deconv1d_forward.2} parent=0 // loop_exit
    _

</llo_original>
